<compile_context>
chip_gen: v5e
topology: v5e:2x2
jax: 0.10.0
libtpu: 0.0.40
codegen_flags: <defaults>
</compile_context>

<pallas_src>
import jax
import jax.numpy as jnp
from jax import lax
from jax.experimental import pallas as pl
from jax.experimental.pallas import tpu as pltpu


def rcab_kernel(x_ref, w1_ref, b1_ref, w2_ref, b2_ref,
                wdt_ref, bdt_ref, wu_ref, bu_ref, out_ref):
    # x_ref    : (1, H, W, C) f32   one batch element, NHWC
    # w1/w2    : (3C, 3C) bf16      w[dy*C + ci, dx*C + co] = W[dy, dx, ci, co]
    # b1/b2/bu : (1, C) f32
    # wdt      : (C//16, C) f32     transposed squeeze weight
    # bdt      : (C//16, 1) f32
    # wu       : (C//16, C) f32
    # out_ref  : (1, H, W, C) f32
    H, W, C = out_ref.shape[1], out_ref.shape[2], out_ref.shape[3]

    # Column index, hoisted (shared by both convs).
    col = lax.broadcasted_iota(jnp.int32, (H, W, C), 1)

    def conv3x3(src, w_ref, bias):
        # src: (H, W, C).  H padding = zero rows along the untiled leading dim.
        src_bf = src.astype(jnp.bfloat16)
        zrow = jnp.zeros((1, W, C), jnp.bfloat16)
        hpad = jnp.concatenate([zrow, src_bf, zrow], axis=0)        # (H+2, W, C)
        # Fold the three dy taps into the contraction dim (K = 3C).
        pcat = jnp.concatenate(
            [hpad[0:H], hpad[1:H + 1], hpad[2:H + 2]], axis=-1)      # (H, W, 3C)
        # Free relayout because W is a multiple of 8 at these shapes.
        pflat = pcat.reshape(H * W, 3 * C)
        # Single merged MXU dot: all three dx taps at once (N = 3C), bf16
        # operands with f32 accumulation.
        scat = jnp.dot(pflat, w_ref[...],
                       preferred_element_type=jnp.float32).reshape(H, W, 3 * C)
        s0 = scat[:, :, 0:C]          # dx = 0 partial output
        s1 = scat[:, :, C:2 * C]      # dx = 1
        s2 = scat[:, :, 2 * C:3 * C]  # dx = 2
        # dx composition: out[h, w] = s0[h, w-1] + s1[h, w] + s2[h, w+1]
        # (zero outside W).  Shifts on the XLU via roll, edges masked out.
        s0_sh = jnp.where(col > 0, pltpu.roll(s0, shift=1, axis=1), 0.0)
        s2_sh = jnp.where(col < W - 1, pltpu.roll(s2, shift=W - 1, axis=1), 0.0)
        return s1 + s0_sh + s2_sh + bias              # bias (1, C) broadcasts

    x = x_ref[0]                                       # (H, W, C) f32

    # ---- conv1 + ReLU ----
    r1 = jnp.maximum(conv3x3(x, w1_ref, b1_ref[...]), 0.0)

    # ---- conv2 ----
    r2 = conv3x3(r1, w2_ref, b2_ref[...])

    # ---- channel attention: GAP -> 1x1 -> ReLU -> 1x1 -> sigmoid (VPU/XLU) --
    pooled = jnp.mean(r2.reshape(H * W, C), axis=0, keepdims=True)      # (1, C)
    y1 = jnp.maximum(
        jnp.sum(pooled * wdt_ref[...], axis=1, keepdims=True) + bdt_ref[...],
        0.0)                                                            # (Cr, 1)
    y2 = jax.nn.sigmoid(
        jnp.sum(y1 * wu_ref[...], axis=0, keepdims=True) + bu_ref[...])  # (1, C)

    # ---- gate + residual ----
    out_ref[0] = r2 * y2 + x


@jax.jit
def rcab_forward(x_nhwc, w1, b1, w2, b2, wd, bd, wu, bu):
    """x_nhwc: (N, H, W, C); w1/w2: (3, 3, C, C) HWIO (dy, dx, ci, co);
    b1/b2/bu: (C,); wd: (C, C//16); bd: (C//16,); wu: (C//16, C)."""
    N, H, W, C = x_nhwc.shape
    Cr = wd.shape[1]

    def merge_conv_weight(w):
        # (dy, dx, ci, co) -> merged (3C, 3C): [dy*C + ci, dx*C + co],
        # pre-cast to bf16 (f32 accumulation happens in the kernel dot).
        wm = jnp.transpose(w, (1, 0, 2, 3)).reshape(3, 3 * C, C)   # (dx, dy*C+ci, co)
        wm = jnp.transpose(wm, (1, 0, 2)).reshape(3 * C, 3 * C)    # (dy*C+ci, dx*C+co)
        return wm.astype(jnp.bfloat16)

    w1m = merge_conv_weight(w1)
    w2m = merge_conv_weight(w2)

    # VMEM budget sized from the actual per-step footprint (intermediates are
    # ~a dozen image-sized buffers + double-buffered I/O + weights).
    img_bytes = H * W * C * 4
    vmem_limit = int(min(96 * 2**20,
                         max(32 * 2**20,
                             24 * img_bytes + 8 * (3 * C) * (3 * C) * 2)))

    cost = pl.CostEstimate(
        flops=int(2 * (2 * N * H * W * 9 * C * C) + 4 * N * C * Cr),
        transcendentals=int(N * C),
        bytes_accessed=int(2 * N * img_bytes                 # x in + out
                           + 2 * (3 * C) * (3 * C) * 2       # bf16 conv weights
                           + (2 * C + Cr + 2 * Cr * C + C) * 4),
    )

    grid_spec = pltpu.PrefetchScalarGridSpec(
        num_scalar_prefetch=0,
        grid=(N,),
        in_specs=[
            pl.BlockSpec((1, H, W, C), lambda n: (n, 0, 0, 0)),
            pl.BlockSpec((3 * C, 3 * C), lambda n: (0, 0)),
            pl.BlockSpec((1, C), lambda n: (0, 0)),
            pl.BlockSpec((3 * C, 3 * C), lambda n: (0, 0)),
            pl.BlockSpec((1, C), lambda n: (0, 0)),
            pl.BlockSpec((Cr, C), lambda n: (0, 0)),
            pl.BlockSpec((Cr, 1), lambda n: (0, 0)),
            pl.BlockSpec((Cr, C), lambda n: (0, 0)),
            pl.BlockSpec((1, C), lambda n: (0, 0)),
        ],
        out_specs=pl.BlockSpec((1, H, W, C), lambda n: (n, 0, 0, 0)),
    )

    return pl.pallas_call(
        rcab_kernel,
        out_shape=jax.ShapeDtypeStruct((N, H, W, C), jnp.float32),
        grid_spec=grid_spec,
        compiler_params=pltpu.CompilerParams(
            dimension_semantics=("parallel",),
            vmem_limit_bytes=vmem_limit),
        cost_estimate=cost,
    )(x_nhwc, w1m, b1.reshape(1, C), w2m, b2.reshape(1, C),
      wd.T, bd.reshape(Cr, 1), wu, bu.reshape(1, C))


def rcab_reference(x_nhwc, w1, b1, w2, b2, wd, bd, wu, bu):
    """Pure-JAX f32 reference mirroring the PyTorch module (NHWC layout)."""
    C = x_nhwc.shape[-1]

    def conv3x3(x, w, b):
        y = lax.conv_general_dilated(
            x, w, window_strides=(1, 1), padding="SAME",
            dimension_numbers=("NHWC", "HWIO", "NHWC"))
        return y + b.reshape(1, 1, 1, C)

    r = jax.nn.relu(conv3x3(x_nhwc, w1, b1))
    r = conv3x3(r, w2, b2)
    pooled = r.mean(axis=(1, 2))                       # (N, C)
    y1 = jax.nn.relu(pooled @ wd + bd)                 # (N, C//16)
    y2 = jax.nn.sigmoid(y1 @ wu + bu)                  # (N, C)
    return r * y2[:, None, None, :] + x_nhwc


if __name__ == "__main__":
    # n_feat must be >= 16 (CALayer reduction=16); keep shapes small.
    N, C, H, W = 2, 32, 16, 16
    Cr = C // 16

    key = jax.random.PRNGKey(0)
    ks = jax.random.split(key, 9)

    # 3x3 conv weights in HWIO (dy, dx, ci, co); 1x1 conv weights as dense mats.
    w1 = jax.random.normal(ks[0], (3, 3, C, C), jnp.float32) * 0.05
    b1 = jax.random.normal(ks[1], (C,), jnp.float32) * 0.05
    w2 = jax.random.normal(ks[2], (3, 3, C, C), jnp.float32) * 0.05
    b2 = jax.random.normal(ks[3], (C,), jnp.float32) * 0.05
    wd = jax.random.normal(ks[4], (C, Cr), jnp.float32) * 0.05
    bd = jax.random.normal(ks[5], (Cr,), jnp.float32) * 0.05
    wu = jax.random.normal(ks[6], (Cr, C), jnp.float32) * 0.05
    bu = jax.random.normal(ks[7], (C,), jnp.float32) * 0.05

    # PyTorch module works on NCHW; generate NCHW and move to NHWC for the
    # kernel (channels-last so C sits in the lane dimension).
    x_nchw = jax.random.normal(ks[8], (N, C, H, W), jnp.float32)
    x_nhwc = jnp.transpose(x_nchw, (0, 2, 3, 1))

    out = jax.block_until_ready(
        rcab_forward(x_nhwc, w1, b1, w2, b2, wd, bd, wu, bu))
    ref = rcab_reference(x_nhwc, w1, b1, w2, b2, wd, bd, wu, bu)

    assert out.shape == (N, H, W, C)
    max_err = float(jnp.max(jnp.abs(out - ref)))
    # bf16 conv operands with f32 accumulation: ~1e-2-level absolute error
    # against the f32 reference is expected.
    assert jnp.allclose(out, ref, rtol=5e-2, atol=5e-2), max_err
    print("KERNEL_OK")
</pallas_src>

<mosaic_0001>
module attributes {stable_mosaic.version = 11 : i64} {
  func.func @rcab_kernel(%arg0: i32, %arg1: memref<1x16x16x32xf32, #tpu.memory_space<vmem>>, %arg2: memref<96x96xbf16, #tpu.memory_space<vmem>>, %arg3: memref<1x32xf32, #tpu.memory_space<vmem>>, %arg4: memref<96x96xbf16, #tpu.memory_space<vmem>>, %arg5: memref<1x32xf32, #tpu.memory_space<vmem>>, %arg6: memref<2x32xf32, #tpu.memory_space<vmem>>, %arg7: memref<2x1xf32, #tpu.memory_space<vmem>>, %arg8: memref<2x32xf32, #tpu.memory_space<vmem>>, %arg9: memref<1x32xf32, #tpu.memory_space<vmem>>, %arg10: memref<1x16x16x32xf32, #tpu.memory_space<vmem>>) attributes {dimension_semantics = [#tpu.dimension_semantics<parallel>], iteration_bounds = array<i64: 2>, scalar_prefetch = 0 : i64, scratch_operands = 0 : i64, tpu.core_type = #tpu.core_type<tc>, window_params = [{transform_indices = @transform_0, window_bounds = array<i64: 1, 16, 16, 32>}, {pipeline_mode = #tpu.pipeline_mode<synchronous>, transform_indices = @transform_1, window_bounds = array<i64: 96, 96>}, {pipeline_mode = #tpu.pipeline_mode<synchronous>, transform_indices = @transform_2, window_bounds = array<i64: 1, 32>}, {pipeline_mode = #tpu.pipeline_mode<synchronous>, transform_indices = @transform_3, window_bounds = array<i64: 96, 96>}, {pipeline_mode = #tpu.pipeline_mode<synchronous>, transform_indices = @transform_4, window_bounds = array<i64: 1, 32>}, {pipeline_mode = #tpu.pipeline_mode<synchronous>, transform_indices = @transform_5, window_bounds = array<i64: 2, 32>}, {pipeline_mode = #tpu.pipeline_mode<synchronous>, transform_indices = @transform_6, window_bounds = array<i64: 2, 1>}, {pipeline_mode = #tpu.pipeline_mode<synchronous>, transform_indices = @transform_7, window_bounds = array<i64: 2, 32>}, {pipeline_mode = #tpu.pipeline_mode<synchronous>, transform_indices = @transform_8, window_bounds = array<i64: 1, 32>}, {transform_indices = @transform_9, window_bounds = array<i64: 1, 16, 16, 32>}]} {
    %0 = tpu.iota {dimensions = array<i32: 1>} : vector<16x16x32xi32>
    %c0 = arith.constant 0 : index
    %c0_0 = arith.constant 0 : index
    %c0_1 = arith.constant 0 : index
    %c0_2 = arith.constant 0 : index
    %1 = vector.load %arg1[%c0, %c0_0, %c0_1, %c0_2] : memref<1x16x16x32xf32, #tpu.memory_space<vmem>>, vector<1x16x16x32xf32>
    %2 = vector.shape_cast %1 : vector<1x16x16x32xf32> to vector<16x16x32xf32>
    %c0_3 = arith.constant 0 : index
    %c0_4 = arith.constant 0 : index
    %3 = vector.load %arg3[%c0_3, %c0_4] : memref<1x32xf32, #tpu.memory_space<vmem>>, vector<1x32xf32>
    %4 = arith.truncf %2 : vector<16x16x32xf32> to vector<16x16x32xbf16>
    %cst = arith.constant 0.000000e+00 : bf16
    %5 = vector.broadcast %cst : bf16 to vector<1x16x32xbf16>
    %6 = tpu.concatenate %5, %4, %5 in 0 : vector<1x16x32xbf16>, vector<16x16x32xbf16>, vector<1x16x32xbf16> -> vector<18x16x32xbf16>
    %7 = vector.extract_strided_slice %6 {offsets = [0, 0, 0], sizes = [16, 16, 32], strides = [1, 1, 1]} : vector<18x16x32xbf16> to vector<16x16x32xbf16>
    %8 = vector.extract_strided_slice %6 {offsets = [1, 0, 0], sizes = [16, 16, 32], strides = [1, 1, 1]} : vector<18x16x32xbf16> to vector<16x16x32xbf16>
    %9 = vector.extract_strided_slice %6 {offsets = [2, 0, 0], sizes = [16, 16, 32], strides = [1, 1, 1]} : vector<18x16x32xbf16> to vector<16x16x32xbf16>
    %10 = tpu.concatenate %7, %8, %9 in 2 : vector<16x16x32xbf16>, vector<16x16x32xbf16>, vector<16x16x32xbf16> -> vector<16x16x96xbf16>
    %11 = vector.shape_cast %10 : vector<16x16x96xbf16> to vector<256x96xbf16>
    %c0_5 = arith.constant 0 : index
    %c0_6 = arith.constant 0 : index
    %12 = vector.load %arg2[%c0_5, %c0_6] : memref<96x96xbf16, #tpu.memory_space<vmem>>, vector<96x96xbf16>
    %cst_7 = arith.constant dense<0.000000e+00> : vector<256x96xf32>
    %13 = tpu.matmul %11, %12, %cst_7 {dimension_numbers = #tpu.dot_dimension_numbers<[1], [0], [0], [1], [0, 0, 1, 1], [], []>} : vector<256x96xbf16>, vector<96x96xbf16>, vector<256x96xf32> -> vector<256x96xf32>
    %14 = vector.shape_cast %13 : vector<256x96xf32> to vector<16x16x96xf32>
    %15 = vector.extract_strided_slice %14 {offsets = [0, 0, 0], sizes = [16, 16, 32], strides = [1, 1, 1]} : vector<16x16x96xf32> to vector<16x16x32xf32>
    %16 = vector.extract_strided_slice %14 {offsets = [0, 0, 32], sizes = [16, 16, 32], strides = [1, 1, 1]} : vector<16x16x96xf32> to vector<16x16x32xf32>
    %17 = vector.extract_strided_slice %14 {offsets = [0, 0, 64], sizes = [16, 16, 32], strides = [1, 1, 1]} : vector<16x16x96xf32> to vector<16x16x32xf32>
    %c0_i32 = arith.constant 0 : i32
    %18 = vector.broadcast %c0_i32 : i32 to vector<16x16x32xi32>
    %19 = arith.cmpi sgt, %0, %18 : vector<16x16x32xi32>
    %c1_i32 = arith.constant 1 : i32
    %20 = tpu.dynamic_rotate %15 by %c1_i32 dim 1 : vector<16x16x32xf32>, i32 -> vector<16x16x32xf32>
    %cst_8 = arith.constant 0.000000e+00 : f32
    %21 = vector.broadcast %cst_8 : f32 to vector<16x16x32xf32>
    %22 = arith.select %19, %20, %21 : vector<16x16x32xi1>, vector<16x16x32xf32>
    %c15_i32 = arith.constant 15 : i32
    %23 = vector.broadcast %c15_i32 : i32 to vector<16x16x32xi32>
    %24 = arith.cmpi slt, %0, %23 : vector<16x16x32xi32>
    %c15_i32_9 = arith.constant 15 : i32
    %25 = tpu.dynamic_rotate %17 by %c15_i32_9 dim 1 : vector<16x16x32xf32>, i32 -> vector<16x16x32xf32>
    %cst_10 = arith.constant 0.000000e+00 : f32
    %26 = vector.broadcast %cst_10 : f32 to vector<16x16x32xf32>
    %27 = arith.select %24, %25, %26 : vector<16x16x32xi1>, vector<16x16x32xf32>
    %28 = arith.addf %16, %22 : vector<16x16x32xf32>
    %29 = arith.addf %28, %27 : vector<16x16x32xf32>
    %30 = vector.shape_cast %3 : vector<1x32xf32> to vector<1x1x32xf32>
    %31 = vector.broadcast %30 : vector<1x1x32xf32> to vector<16x16x32xf32>
    %32 = arith.addf %29, %31 : vector<16x16x32xf32>
    %cst_11 = arith.constant 0.000000e+00 : f32
    %33 = vector.broadcast %cst_11 : f32 to vector<16x16x32xf32>
    %34 = arith.maximumf %32, %33 : vector<16x16x32xf32>
    %c0_12 = arith.constant 0 : index
    %c0_13 = arith.constant 0 : index
    %35 = vector.load %arg5[%c0_12, %c0_13] : memref<1x32xf32, #tpu.memory_space<vmem>>, vector<1x32xf32>
    %36 = arith.truncf %34 : vector<16x16x32xf32> to vector<16x16x32xbf16>
    %cst_14 = arith.constant 0.000000e+00 : bf16
    %37 = vector.broadcast %cst_14 : bf16 to vector<1x16x32xbf16>
    %38 = tpu.concatenate %37, %36, %37 in 0 : vector<1x16x32xbf16>, vector<16x16x32xbf16>, vector<1x16x32xbf16> -> vector<18x16x32xbf16>
    %39 = vector.extract_strided_slice %38 {offsets = [0, 0, 0], sizes = [16, 16, 32], strides = [1, 1, 1]} : vector<18x16x32xbf16> to vector<16x16x32xbf16>
    %40 = vector.extract_strided_slice %38 {offsets = [1, 0, 0], sizes = [16, 16, 32], strides = [1, 1, 1]} : vector<18x16x32xbf16> to vector<16x16x32xbf16>
    %41 = vector.extract_strided_slice %38 {offsets = [2, 0, 0], sizes = [16, 16, 32], strides = [1, 1, 1]} : vector<18x16x32xbf16> to vector<16x16x32xbf16>
    %42 = tpu.concatenate %39, %40, %41 in 2 : vector<16x16x32xbf16>, vector<16x16x32xbf16>, vector<16x16x32xbf16> -> vector<16x16x96xbf16>
    %43 = vector.shape_cast %42 : vector<16x16x96xbf16> to vector<256x96xbf16>
    %c0_15 = arith.constant 0 : index
    %c0_16 = arith.constant 0 : index
    %44 = vector.load %arg4[%c0_15, %c0_16] : memref<96x96xbf16, #tpu.memory_space<vmem>>, vector<96x96xbf16>
    %cst_17 = arith.constant dense<0.000000e+00> : vector<256x96xf32>
    %45 = tpu.matmul %43, %44, %cst_17 {dimension_numbers = #tpu.dot_dimension_numbers<[1], [0], [0], [1], [0, 0, 1, 1], [], []>} : vector<256x96xbf16>, vector<96x96xbf16>, vector<256x96xf32> -> vector<256x96xf32>
    %46 = vector.shape_cast %45 : vector<256x96xf32> to vector<16x16x96xf32>
    %47 = vector.extract_strided_slice %46 {offsets = [0, 0, 0], sizes = [16, 16, 32], strides = [1, 1, 1]} : vector<16x16x96xf32> to vector<16x16x32xf32>
    %48 = vector.extract_strided_slice %46 {offsets = [0, 0, 32], sizes = [16, 16, 32], strides = [1, 1, 1]} : vector<16x16x96xf32> to vector<16x16x32xf32>
    %49 = vector.extract_strided_slice %46 {offsets = [0, 0, 64], sizes = [16, 16, 32], strides = [1, 1, 1]} : vector<16x16x96xf32> to vector<16x16x32xf32>
    %c0_i32_18 = arith.constant 0 : i32
    %50 = vector.broadcast %c0_i32_18 : i32 to vector<16x16x32xi32>
    %51 = arith.cmpi sgt, %0, %50 : vector<16x16x32xi32>
    %c1_i32_19 = arith.constant 1 : i32
    %52 = tpu.dynamic_rotate %47 by %c1_i32_19 dim 1 : vector<16x16x32xf32>, i32 -> vector<16x16x32xf32>
    %cst_20 = arith.constant 0.000000e+00 : f32
    %53 = vector.broadcast %cst_20 : f32 to vector<16x16x32xf32>
    %54 = arith.select %51, %52, %53 : vector<16x16x32xi1>, vector<16x16x32xf32>
    %c15_i32_21 = arith.constant 15 : i32
    %55 = vector.broadcast %c15_i32_21 : i32 to vector<16x16x32xi32>
    %56 = arith.cmpi slt, %0, %55 : vector<16x16x32xi32>
    %c15_i32_22 = arith.constant 15 : i32
    %57 = tpu.dynamic_rotate %49 by %c15_i32_22 dim 1 : vector<16x16x32xf32>, i32 -> vector<16x16x32xf32>
    %cst_23 = arith.constant 0.000000e+00 : f32
    %58 = vector.broadcast %cst_23 : f32 to vector<16x16x32xf32>
    %59 = arith.select %56, %57, %58 : vector<16x16x32xi1>, vector<16x16x32xf32>
    %60 = arith.addf %48, %54 : vector<16x16x32xf32>
    %61 = arith.addf %60, %59 : vector<16x16x32xf32>
    %62 = vector.shape_cast %35 : vector<1x32xf32> to vector<1x1x32xf32>
    %63 = vector.broadcast %62 : vector<1x1x32xf32> to vector<16x16x32xf32>
    %64 = arith.addf %61, %63 : vector<16x16x32xf32>
    %65 = vector.shape_cast %64 : vector<16x16x32xf32> to vector<256x32xf32>
    %cst_24 = arith.constant dense<0.000000e+00> : vector<32xf32>
    %66 = vector.multi_reduction <add>, %65, %cst_24 [0] : vector<256x32xf32> to vector<32xf32>
    %67 = vector.shape_cast %66 : vector<32xf32> to vector<1x32xf32>
    %cst_25 = arith.constant 2.560000e+02 : f32
    %68 = vector.broadcast %cst_25 : f32 to vector<1x32xf32>
    %69 = arith.divf %67, %68 : vector<1x32xf32>
    %c0_26 = arith.constant 0 : index
    %c0_27 = arith.constant 0 : index
    %70 = vector.load %arg6[%c0_26, %c0_27] : memref<2x32xf32, #tpu.memory_space<vmem>>, vector<2x32xf32>
    %71 = vector.broadcast %69 : vector<1x32xf32> to vector<2x32xf32>
    %72 = arith.mulf %71, %70 : vector<2x32xf32>
    %cst_28 = arith.constant dense<0.000000e+00> : vector<2xf32>
    %73 = vector.multi_reduction <add>, %72, %cst_28 [1] : vector<2x32xf32> to vector<2xf32>
    %74 = vector.shape_cast %73 : vector<2xf32> to vector<2x1xf32>
    %c0_29 = arith.constant 0 : index
    %c0_30 = arith.constant 0 : index
    %75 = vector.load %arg7[%c0_29, %c0_30] : memref<2x1xf32, #tpu.memory_space<vmem>>, vector<2x1xf32>
    %76 = arith.addf %74, %75 : vector<2x1xf32>
    %cst_31 = arith.constant 0.000000e+00 : f32
    %77 = vector.broadcast %cst_31 : f32 to vector<2x1xf32>
    %78 = arith.maximumf %76, %77 : vector<2x1xf32>
    %c0_32 = arith.constant 0 : index
    %c0_33 = arith.constant 0 : index
    %79 = vector.load %arg8[%c0_32, %c0_33] : memref<2x32xf32, #tpu.memory_space<vmem>>, vector<2x32xf32>
    %80 = vector.broadcast %78 : vector<2x1xf32> to vector<2x32xf32>
    %81 = arith.mulf %80, %79 : vector<2x32xf32>
    %cst_34 = arith.constant dense<0.000000e+00> : vector<32xf32>
    %82 = vector.multi_reduction <add>, %81, %cst_34 [0] : vector<2x32xf32> to vector<32xf32>
    %83 = vector.shape_cast %82 : vector<32xf32> to vector<1x32xf32>
    %c0_35 = arith.constant 0 : index
    %c0_36 = arith.constant 0 : index
    %84 = vector.load %arg9[%c0_35, %c0_36] : memref<1x32xf32, #tpu.memory_space<vmem>>, vector<1x32xf32>
    %85 = arith.addf %83, %84 : vector<1x32xf32>
    %86 = arith.negf %85 : vector<1x32xf32>
    %87 = math.exp %86 : vector<1x32xf32>
    %cst_37 = arith.constant 1.000000e+00 : f32
    %88 = vector.broadcast %cst_37 : f32 to vector<1x32xf32>
    %89 = arith.addf %88, %87 : vector<1x32xf32>
    %90 = arith.divf %88, %89 : vector<1x32xf32>
    %91 = vector.shape_cast %90 : vector<1x32xf32> to vector<1x1x32xf32>
    %92 = vector.broadcast %91 : vector<1x1x32xf32> to vector<16x16x32xf32>
    %93 = arith.mulf %64, %92 : vector<16x16x32xf32>
    %94 = arith.addf %93, %2 : vector<16x16x32xf32>
    %c0_38 = arith.constant 0 : index
    %c0_39 = arith.constant 0 : index
    %c0_40 = arith.constant 0 : index
    %c0_41 = arith.constant 0 : index
    %95 = vector.load %arg10[%c0_38, %c0_39, %c0_40, %c0_41] : memref<1x16x16x32xf32, #tpu.memory_space<vmem>>, vector<1x16x16x32xf32>
    %96 = vector.shape_cast %95 : vector<1x16x16x32xf32> to vector<16x16x32xf32>
    %97 = vector.shape_cast %94 : vector<16x16x32xf32> to vector<1x16x16x32xf32>
    tpu.vector_store %arg10[%c0_38, %c0_39, %c0_40, %c0_41], %97 {strides = array<i32>} : memref<1x16x16x32xf32, #tpu.memory_space<vmem>>, vector<1x16x16x32xf32>,
    return
  }
  func.func @transform_0(%arg0: i32) -> (i32, i32, i32, i32) {
    %c0_i32 = arith.constant 0 : i32
    %c0_i32_0 = arith.constant 0 : i32
    %c0_i32_1 = arith.constant 0 : i32
    %c0_i32_2 = arith.constant 0 : i32
    return %arg0, %c0_i32, %c0_i32_0, %c0_i32_1 : i32, i32, i32, i32
  }
  func.func @transform_1(%arg0: i32) -> (i32, i32) {
    %c0_i32 = arith.constant 0 : i32
    %c0_i32_0 = arith.constant 0 : i32
    %c0_i32_1 = arith.constant 0 : i32
    return %c0_i32, %c0_i32_0 : i32, i32
  }
  func.func @transform_2(%arg0: i32) -> (i32, i32) {
    %c0_i32 = arith.constant 0 : i32
    %c0_i32_0 = arith.constant 0 : i32
    %c0_i32_1 = arith.constant 0 : i32
    return %c0_i32, %c0_i32_0 : i32, i32
  }
  func.func @transform_3(%arg0: i32) -> (i32, i32) {
    %c0_i32 = arith.constant 0 : i32
    %c0_i32_0 = arith.constant 0 : i32
    %c0_i32_1 = arith.constant 0 : i32
    return %c0_i32, %c0_i32_0 : i32, i32
  }
  func.func @transform_4(%arg0: i32) -> (i32, i32) {
    %c0_i32 = arith.constant 0 : i32
    %c0_i32_0 = arith.constant 0 : i32
    %c0_i32_1 = arith.constant 0 : i32
    return %c0_i32, %c0_i32_0 : i32, i32
  }
  func.func @transform_5(%arg0: i32) -> (i32, i32) {
    %c0_i32 = arith.constant 0 : i32
    %c0_i32_0 = arith.constant 0 : i32
    %c0_i32_1 = arith.constant 0 : i32
    return %c0_i32, %c0_i32_0 : i32, i32
  }
  func.func @transform_6(%arg0: i32) -> (i32, i32) {
    %c0_i32 = arith.constant 0 : i32
    %c0_i32_0 = arith.constant 0 : i32
    %c0_i32_1 = arith.constant 0 : i32
    return %c0_i32, %c0_i32_0 : i32, i32
  }
  func.func @transform_7(%arg0: i32) -> (i32, i32) {
    %c0_i32 = arith.constant 0 : i32
    %c0_i32_0 = arith.constant 0 : i32
    %c0_i32_1 = arith.constant 0 : i32
    return %c0_i32, %c0_i32_0 : i32, i32
  }
  func.func @transform_8(%arg0: i32) -> (i32, i32) {
    %c0_i32 = arith.constant 0 : i32
    %c0_i32_0 = arith.constant 0 : i32
    %c0_i32_1 = arith.constant 0 : i32
    return %c0_i32, %c0_i32_0 : i32, i32
  }
  func.func @transform_9(%arg0: i32) -> (i32, i32, i32, i32) {
    %c0_i32 = arith.constant 0 : i32
    %c0_i32_0 = arith.constant 0 : i32
    %c0_i32_1 = arith.constant 0 : i32
    %c0_i32_2 = arith.constant 0 : i32
    return %arg0, %c0_i32, %c0_i32_0, %c0_i32_1 : i32, i32, i32, i32
  }
}

</mosaic_0001>

<llo_original>
// kernel: rcab_forward.1
$region0: #{rcab_forward.1}
  #allocation0 [shape = 'u32[]', space=smem, size = 0x4, offset = 0x4, fixed_abs, tag = 'smem constant byte address 0x4 - core index']
  #allocation1 [shape = 'u32[72,128]{1,0:T(1,128)}', space=vmem, size = 0x9000, scoped, tag = 'internal scratch']
  %s0 = inlined_call_operand.vmem [shape: f32[2,16,16,32], index: 0, kind: input, shape index: {}]
  %s1 = inlined_call_operand.vmem [shape: bf16[96,96], index: 1, kind: input, shape index: {}]
  %s2 = inlined_call_operand.vmem [shape: f32[1,32], index: 2, kind: input, shape index: {}]
  %s3 = inlined_call_operand.vmem [shape: bf16[96,96], index: 3, kind: input, shape index: {}]
  %s4 = inlined_call_operand.vmem [shape: f32[1,32], index: 4, kind: input, shape index: {}]
  %s5 = inlined_call_operand.vmem [shape: f32[2,32], index: 5, kind: input, shape index: {}]
  %s6 = inlined_call_operand.vmem [shape: f32[2,1], index: 6, kind: input, shape index: {}]
  %s7 = inlined_call_operand.vmem [shape: f32[2,32], index: 7, kind: input, shape index: {}]
  %s8 = inlined_call_operand.vmem [shape: f32[1,32], index: 8, kind: input, shape index: {}]
  %s9 = inlined_call_operand.hbm [shape: f32[2,16,16,32], index: 9, kind: output, shape index: {}]
  %s10 = sld [smem:[#allocation0]]
  $region69: #{rcab_forward.1} parent=0
    _
  %s12 = ssub.s32 1, %s10
  %s13 = scalar_select 0, %s12, %s10
  $region1: #{rcab_forward.1} parent=0
    #allocation2 [shape = 'u8[262144]{0}', space=vmem, size = 0x40000, scoped, tag = 'output window, operand 0']
    #allocation3 [shape = 's32[2]{0}', space=sflag, size = 0x8, scoped, tag = 'scoped memory for rcab_forward.1']
    %14 = vsyncpa [#allocation3], 0
    %s15 = scalar_lea.sflag [#allocation3], 1
    %16 = vsyncpa %s15, 0
    loop: start=0, step=1, limit=4
    $region2: #{rcab_forward.1} parent=1 // loop_pre_header
      _
    $region3: #{rcab_forward.1} parent=1 // loop_header
      %s18 = sphi 0, %s22
      %p19 = scmp.ge.s32.totalorder %s18, 4
      %s28 = sphi 0, %s30
      %s31 = sphi 0, %s28
      %s32 = sphi 0, %s31
      %s48 = sphi 0, %s32
      %s52 = sphi 0, %s52
      %s54 = sphi 0, %s52
      %s55 = sphi 0, %s54
      %s69 = sphi 0, %s55
      %s73 = sphi 0, %s73
      %s75 = sphi 0, %s73
      %s76 = sphi 0, %s75
      %s90 = sphi 0, %s76
      %s94 = sphi 0, %s94
      %s96 = sphi 0, %s94
      %s97 = sphi 0, %s96
      %s111 = sphi 0, %s97
      %s115 = sphi 0, %s115
      %s117 = sphi 0, %s115
      %s118 = sphi 0, %s117
      %s132 = sphi 0, %s118
      %s136 = sphi 0, %s136
      %s138 = sphi 0, %s136
      %s139 = sphi 0, %s138
      %s153 = sphi 0, %s139
      %s157 = sphi 0, %s157
      %s159 = sphi 0, %s157
      %s160 = sphi 0, %s159
      %s174 = sphi 0, %s160
      %s178 = sphi 0, %s178
      %s180 = sphi 0, %s178
      %s181 = sphi 0, %s180
      %s195 = sphi 0, %s181
      %s199 = sphi 0, %s199
      %s201 = sphi 0, %s199
      %s202 = sphi 0, %s201
      %s216 = sphi 0, %s202
      %s222 = sphi 0, %s224
      %s225 = sphi 0, %s222
      %s226 = sphi 0, %s225
      %s242 = sphi 0, %s226
    $region4: #{rcab_forward.1} parent=1 // loop_header_branch
      %21 = sbr.rel (%p19) target = $region8
    $region5: #{rcab_forward.1} parent=1 // loop_body
      %s23 = ssub.s32 %s18, 1
      %s24 = ssub.s32 %s18, 2
      %s25 = sadd.s32 %s18, 1
      %s26 = ssub.s32 %s18, %s25
      %p27 = scmp.eq.s32.totalorder %s26, 0
      %s29 = sadd.s32 %s28, 1
      %s30 = scalar_select %p27, %s28, %s29
      %p33 = pneg %p27
      %p34 = scmp.eq.s32.totalorder %s18, 1
      %p35 = por %p33, %p34
      %p36 = scmp.ne.s32.totalorder %s28, %s31
      %p37 = scmp.eq.s32.totalorder %s18, 0
      %p38 = por %p36, %p37
      %p39 = scmp.ne.s32.totalorder %s28, %s31
      %p40 = scmp.eq.s32.totalorder %s23, 1
      %p41 = por %p39, %p40
      %p42 = scmp.ne.s32.totalorder %s31, %s32
      %p43 = scmp.eq.s32.totalorder %s23, 0
      %p44 = por %p42, %p43
      %p45 = scmp.ne.s32.totalorder %s31, %s32
      %p46 = scmp.eq.s32.totalorder %s24, 1
      %p47 = por %p45, %p46
      %p49 = scmp.ne.s32.totalorder %s32, %s48
      %p50 = scmp.eq.s32.totalorder %s24, 0
      %p51 = por %p49, %p50
      %s53 = sadd.s32 %s52, 1
      %p56 = scmp.eq.s32.totalorder %s18, 1
      %p57 = scmp.ne.s32.totalorder %s52, %s54
      %p58 = scmp.eq.s32.totalorder %s18, 0
      %p59 = por %p57, %p58
      %p60 = scmp.ne.s32.totalorder %s52, %s54
      %p61 = scmp.eq.s32.totalorder %s23, 1
      %p62 = por %p60, %p61
      %p63 = scmp.ne.s32.totalorder %s54, %s55
      %p64 = scmp.eq.s32.totalorder %s23, 0
      %p65 = por %p63, %p64
      %p66 = scmp.ne.s32.totalorder %s54, %s55
      %p67 = scmp.eq.s32.totalorder %s24, 1
      %p68 = por %p66, %p67
      %p70 = scmp.ne.s32.totalorder %s55, %s69
      %p71 = scmp.eq.s32.totalorder %s24, 0
      %p72 = por %p70, %p71
      %s74 = sadd.s32 %s73, 1
      %p77 = scmp.eq.s32.totalorder %s18, 1
      %p78 = scmp.ne.s32.totalorder %s73, %s75
      %p79 = scmp.eq.s32.totalorder %s18, 0
      %p80 = por %p78, %p79
      %p81 = scmp.ne.s32.totalorder %s73, %s75
      %p82 = scmp.eq.s32.totalorder %s23, 1
      %p83 = por %p81, %p82
      %p84 = scmp.ne.s32.totalorder %s75, %s76
      %p85 = scmp.eq.s32.totalorder %s23, 0
      %p86 = por %p84, %p85
      %p87 = scmp.ne.s32.totalorder %s75, %s76
      %p88 = scmp.eq.s32.totalorder %s24, 1
      %p89 = por %p87, %p88
      %p91 = scmp.ne.s32.totalorder %s76, %s90
      %p92 = scmp.eq.s32.totalorder %s24, 0
      %p93 = por %p91, %p92
      %s95 = sadd.s32 %s94, 1
      %p98 = scmp.eq.s32.totalorder %s18, 1
      %p99 = scmp.ne.s32.totalorder %s94, %s96
      %p100 = scmp.eq.s32.totalorder %s18, 0
      %p101 = por %p99, %p100
      %p102 = scmp.ne.s32.totalorder %s94, %s96
      %p103 = scmp.eq.s32.totalorder %s23, 1
      %p104 = por %p102, %p103
      %p105 = scmp.ne.s32.totalorder %s96, %s97
      %p106 = scmp.eq.s32.totalorder %s23, 0
      %p107 = por %p105, %p106
      %p108 = scmp.ne.s32.totalorder %s96, %s97
      %p109 = scmp.eq.s32.totalorder %s24, 1
      %p110 = por %p108, %p109
      %p112 = scmp.ne.s32.totalorder %s97, %s111
      %p113 = scmp.eq.s32.totalorder %s24, 0
      %p114 = por %p112, %p113
      %s116 = sadd.s32 %s115, 1
      %p119 = scmp.eq.s32.totalorder %s18, 1
      %p120 = scmp.ne.s32.totalorder %s115, %s117
      %p121 = scmp.eq.s32.totalorder %s18, 0
      %p122 = por %p120, %p121
      %p123 = scmp.ne.s32.totalorder %s115, %s117
      %p124 = scmp.eq.s32.totalorder %s23, 1
      %p125 = por %p123, %p124
      %p126 = scmp.ne.s32.totalorder %s117, %s118
      %p127 = scmp.eq.s32.totalorder %s23, 0
      %p128 = por %p126, %p127
      %p129 = scmp.ne.s32.totalorder %s117, %s118
      %p130 = scmp.eq.s32.totalorder %s24, 1
      %p131 = por %p129, %p130
      %p133 = scmp.ne.s32.totalorder %s118, %s132
      %p134 = scmp.eq.s32.totalorder %s24, 0
      %p135 = por %p133, %p134
      %s137 = sadd.s32 %s136, 1
      %p140 = scmp.eq.s32.totalorder %s18, 1
      %p141 = scmp.ne.s32.totalorder %s136, %s138
      %p142 = scmp.eq.s32.totalorder %s18, 0
      %p143 = por %p141, %p142
      %p144 = scmp.ne.s32.totalorder %s136, %s138
      %p145 = scmp.eq.s32.totalorder %s23, 1
      %p146 = por %p144, %p145
      %p147 = scmp.ne.s32.totalorder %s138, %s139
      %p148 = scmp.eq.s32.totalorder %s23, 0
      %p149 = por %p147, %p148
      %p150 = scmp.ne.s32.totalorder %s138, %s139
      %p151 = scmp.eq.s32.totalorder %s24, 1
      %p152 = por %p150, %p151
      %p154 = scmp.ne.s32.totalorder %s139, %s153
      %p155 = scmp.eq.s32.totalorder %s24, 0
      %p156 = por %p154, %p155
      %s158 = sadd.s32 %s157, 1
      %p161 = scmp.eq.s32.totalorder %s18, 1
      %p162 = scmp.ne.s32.totalorder %s157, %s159
      %p163 = scmp.eq.s32.totalorder %s18, 0
      %p164 = por %p162, %p163
      %p165 = scmp.ne.s32.totalorder %s157, %s159
      %p166 = scmp.eq.s32.totalorder %s23, 1
      %p167 = por %p165, %p166
      %p168 = scmp.ne.s32.totalorder %s159, %s160
      %p169 = scmp.eq.s32.totalorder %s23, 0
      %p170 = por %p168, %p169
      %p171 = scmp.ne.s32.totalorder %s159, %s160
      %p172 = scmp.eq.s32.totalorder %s24, 1
      %p173 = por %p171, %p172
      %p175 = scmp.ne.s32.totalorder %s160, %s174
      %p176 = scmp.eq.s32.totalorder %s24, 0
      %p177 = por %p175, %p176
      %s179 = sadd.s32 %s178, 1
      %p182 = scmp.eq.s32.totalorder %s18, 1
      %p183 = scmp.ne.s32.totalorder %s178, %s180
      %p184 = scmp.eq.s32.totalorder %s18, 0
      %p185 = por %p183, %p184
      %p186 = scmp.ne.s32.totalorder %s178, %s180
      %p187 = scmp.eq.s32.totalorder %s23, 1
      %p188 = por %p186, %p187
      %p189 = scmp.ne.s32.totalorder %s180, %s181
      %p190 = scmp.eq.s32.totalorder %s23, 0
      %p191 = por %p189, %p190
      %p192 = scmp.ne.s32.totalorder %s180, %s181
      %p193 = scmp.eq.s32.totalorder %s24, 1
      %p194 = por %p192, %p193
      %p196 = scmp.ne.s32.totalorder %s181, %s195
      %p197 = scmp.eq.s32.totalorder %s24, 0
      %p198 = por %p196, %p197
      %s200 = sadd.s32 %s199, 1
      %p203 = scmp.eq.s32.totalorder %s18, 1
      %p204 = scmp.ne.s32.totalorder %s199, %s201
      %p205 = scmp.eq.s32.totalorder %s18, 0
      %p206 = por %p204, %p205
      %p207 = scmp.ne.s32.totalorder %s199, %s201
      %p208 = scmp.eq.s32.totalorder %s23, 1
      %p209 = por %p207, %p208
      %p210 = scmp.ne.s32.totalorder %s201, %s202
      %p211 = scmp.eq.s32.totalorder %s23, 0
      %p212 = por %p210, %p211
      %p213 = scmp.ne.s32.totalorder %s201, %s202
      %p214 = scmp.eq.s32.totalorder %s24, 1
      %p215 = por %p213, %p214
      %p217 = scmp.ne.s32.totalorder %s202, %s216
      %p218 = scmp.eq.s32.totalorder %s24, 0
      %p219 = por %p217, %p218
      %s220 = ssub.s32 %s18, %s25
      %p221 = scmp.eq.s32.totalorder %s220, 0
      %s223 = sadd.s32 %s222, 1
      %s224 = scalar_select %p221, %s222, %s223
      %p227 = pneg %p221
      %p228 = scmp.eq.s32.totalorder %s18, 1
      %p229 = por %p227, %p228
      %p230 = scmp.ne.s32.totalorder %s222, %s225
      %p231 = scmp.eq.s32.totalorder %s18, 0
      %p232 = por %p230, %p231
      %p233 = scmp.ne.s32.totalorder %s222, %s225
      %p234 = scmp.eq.s32.totalorder %s23, 1
      %p235 = por %p233, %p234
      %p236 = scmp.ne.s32.totalorder %s225, %s226
      %p237 = scmp.eq.s32.totalorder %s23, 0
      %p238 = por %p236, %p237
      %p239 = scmp.ne.s32.totalorder %s225, %s226
      %p240 = scmp.eq.s32.totalorder %s24, 1
      %p241 = por %p239, %p240
      %p243 = scmp.ne.s32.totalorder %s226, %s242
      %p244 = scmp.eq.s32.totalorder %s24, 0
      %p245 = por %p243, %p244
      %p246 = scmp.le.s32.totalorder 1, %s18
      %p247 = scmp.lt.s32.totalorder %s18, 3
      %p248 = pnand %p246, %p247
      %p249 = pneg %p248
      // Predicated region
      $region9: #{rcab_forward.1} parent=5 // pred_check
        _
      $region10: #{rcab_forward.1} parent=5 // pred_check_branch
        %251 = sbr.rel (%p248) target = $region12
      $region11: #{rcab_forward.1} parent=5 // pred_region
        %s252 = ssub.s32 %s18, 1
        // Predicated region
        $region13: #{rcab_forward.1} parent=11 // pred_check
          %p253 = pneg %p65
        $region14: #{rcab_forward.1} parent=11 // pred_check_branch
          %255 = sbr.rel (%p253) target = $region16
        $region15: #{rcab_forward.1} parent=11 // pred_region
          _
        $region16: #{rcab_forward.1} parent=11 // pred_fallthru
          _
        // Predicated region
        $region17: #{rcab_forward.1} parent=11 // pred_check
          %p256 = pneg %p86
        $region18: #{rcab_forward.1} parent=11 // pred_check_branch
          %258 = sbr.rel (%p256) target = $region20
        $region19: #{rcab_forward.1} parent=11 // pred_region
          _
        $region20: #{rcab_forward.1} parent=11 // pred_fallthru
          _
        // Predicated region
        $region21: #{rcab_forward.1} parent=11 // pred_check
          %p259 = pneg %p107
        $region22: #{rcab_forward.1} parent=11 // pred_check_branch
          %261 = sbr.rel (%p259) target = $region24
        $region23: #{rcab_forward.1} parent=11 // pred_region
          _
        $region24: #{rcab_forward.1} parent=11 // pred_fallthru
          _
        // Predicated region
        $region25: #{rcab_forward.1} parent=11 // pred_check
          %p262 = pneg %p128
        $region26: #{rcab_forward.1} parent=11 // pred_check_branch
          %264 = sbr.rel (%p262) target = $region28
        $region27: #{rcab_forward.1} parent=11 // pred_region
          _
        $region28: #{rcab_forward.1} parent=11 // pred_fallthru
          _
        // Predicated region
        $region29: #{rcab_forward.1} parent=11 // pred_check
          %p265 = pneg %p149
        $region30: #{rcab_forward.1} parent=11 // pred_check_branch
          %267 = sbr.rel (%p265) target = $region32
        $region31: #{rcab_forward.1} parent=11 // pred_region
          _
        $region32: #{rcab_forward.1} parent=11 // pred_fallthru
          _
        // Predicated region
        $region33: #{rcab_forward.1} parent=11 // pred_check
          %p268 = pneg %p170
        $region34: #{rcab_forward.1} parent=11 // pred_check_branch
          %270 = sbr.rel (%p268) target = $region36
        $region35: #{rcab_forward.1} parent=11 // pred_region
          _
        $region36: #{rcab_forward.1} parent=11 // pred_fallthru
          _
        // Predicated region
        $region37: #{rcab_forward.1} parent=11 // pred_check
          %p271 = pneg %p191
        $region38: #{rcab_forward.1} parent=11 // pred_check_branch
          %273 = sbr.rel (%p271) target = $region40
        $region39: #{rcab_forward.1} parent=11 // pred_region
          _
        $region40: #{rcab_forward.1} parent=11 // pred_fallthru
          _
        // Predicated region
        $region41: #{rcab_forward.1} parent=11 // pred_check
          %p274 = pneg %p212
        $region42: #{rcab_forward.1} parent=11 // pred_check_branch
          %276 = sbr.rel (%p274) target = $region44
        $region43: #{rcab_forward.1} parent=11 // pred_region
          _
        $region44: #{rcab_forward.1} parent=11 // pred_fallthru
          _
      $region12: #{rcab_forward.1} parent=5 // pred_fallthru
        _
      %p277 = scmp.lt.s32.totalorder %s18, 2
      // Predicated region
      $region45: #{rcab_forward.1} parent=5 // pred_check
        %p278 = pneg %p277
      $region46: #{rcab_forward.1} parent=5 // pred_check_branch
        %280 = sbr.rel (%p278) target = $region48
      $region47: #{rcab_forward.1} parent=5 // pred_region
        // Predicated region
        $region49: #{rcab_forward.1} parent=47 // pred_check
          %p281 = pneg %p38
        $region50: #{rcab_forward.1} parent=47 // pred_check_branch
          %283 = sbr.rel (%p281) target = $region52
        $region51: #{rcab_forward.1} parent=47 // pred_region
          %p284 = scmp.lt.s32.totalorder %s18, 1
          %s285 = scalar_select %p284, %s18, 1
          %s286 = smul.addr %s285, 32
          %s287 = smul.addr %s286, 8
          %s288 = scalar_lea.vmem %s0, %s287
        $region52: #{rcab_forward.1} parent=47 // pred_fallthru
          _
      $region48: #{rcab_forward.1} parent=5 // pred_fallthru
        _
      %p289 = scmp.le.s32.totalorder 1, %s18
      %p290 = scmp.lt.s32.totalorder %s18, 3
      %p291 = pnand %p289, %p290
      %p292 = pneg %p291
      // Predicated region
      $region53: #{rcab_forward.1} parent=5 // pred_check
        _
      $region54: #{rcab_forward.1} parent=5 // pred_check_branch
        %294 = sbr.rel (%p291) target = $region56
      $region55: #{rcab_forward.1} parent=5 // pred_region
        %s295 = ssub.s32 %s18, 1
        %p296 = scmp.lt.s32.totalorder %s23, 1
        %s297 = scalar_select %p296, %s23, 1
        %s298 = smul.addr %s297, 32
        %s299 = smul.addr %s298, 8
        %s300 = scalar_lea.vmem %s0, %s299
        %p301 = pneg %p44
        %p302 = pneg %p41
        %p303 = pneg %p65
        %p304 = pneg %p62
        %p305 = pneg %p86
        %p306 = pneg %p83
        %p307 = pneg %p107
        %p308 = pneg %p104
        %p309 = pneg %p128
        %p310 = pneg %p125
        %p311 = pneg %p149
        %p312 = pneg %p146
        %p313 = pneg %p170
        %p314 = pneg %p167
        %p315 = pneg %p191
        %p316 = pneg %p188
        %p317 = pneg %p212
        %p318 = pneg %p209
        %p319 = pneg %p238
        %p320 = pneg %p235
        %s321 = sand.u32 %s225, 1
        %s322 = scalar_lea.sflag [#allocation3], %s321
        %s323 = sand.u32 %s225, 1
        %s324 = smul.addr %s323, 256
        %s325 = scalar_lea.vmem [#allocation2], %s324
        %p326 = scmp.lt.s32.totalorder %s23, 1
        %s327 = scalar_select %p326, %s23, 1
        %s328 = smul.addr %s327, 32
        %s329 = smul.addr %s328, 8
        %s330 = scalar_lea.vmem %s0, %s329
        %v332 = vlaneseq
        %v333 = vshrl.u32 %v332, 7
        %v334 = vadd.s32 %v333, 8
        %v335 = vld [vmem:[%s330] sm:$0xff]
        %v336 = vld [vmem:[%s330 + $0x8] sm:$0xff]
        %v337 = vld [vmem:[%s330 + $0x10] sm:$0xff]
        %v338 = vld [vmem:[%s330 + $0x18] sm:$0xff]
        %v339 = vld [vmem:[%s330 + $0x20] sm:$0xff]
        %v340 = vld [vmem:[%s330 + $0x28] sm:$0xff]
        %v341 = vld [vmem:[%s330 + $0x30] sm:$0xff]
        %v342 = vld [vmem:[%s330 + $0x38] sm:$0xff]
        %v343 = vld [vmem:[%s330 + $0x40] sm:$0xff]
        %v344 = vld [vmem:[%s330 + $0x48] sm:$0xff]
        %v345 = vld [vmem:[%s330 + $0x50] sm:$0xff]
        %v346 = vld [vmem:[%s330 + $0x58] sm:$0xff]
        %v347 = vld [vmem:[%s330 + $0x60] sm:$0xff]
        %v348 = vld [vmem:[%s330 + $0x68] sm:$0xff]
        %v349 = vld [vmem:[%s330 + $0x70] sm:$0xff]
        %v350 = vld [vmem:[%s330 + $0x78] sm:$0xff]
        %v351 = vld [vmem:[%s330 + $0x80] sm:$0xff]
        %v352 = vld [vmem:[%s330 + $0x88] sm:$0xff]
        %v353 = vld [vmem:[%s330 + $0x90] sm:$0xff]
        %v354 = vld [vmem:[%s330 + $0x98] sm:$0xff]
        %v355 = vld [vmem:[%s330 + $0xa0] sm:$0xff]
        %v356 = vld [vmem:[%s330 + $0xa8] sm:$0xff]
        %v357 = vld [vmem:[%s330 + $0xb0] sm:$0xff]
        %v358 = vld [vmem:[%s330 + $0xb8] sm:$0xff]
        %v359 = vld [vmem:[%s330 + $0xc0] sm:$0xff]
        %v360 = vld [vmem:[%s330 + $0xc8] sm:$0xff]
        %v361 = vld [vmem:[%s330 + $0xd0] sm:$0xff]
        %v362 = vld [vmem:[%s330 + $0xd8] sm:$0xff]
        %v363 = vld [vmem:[%s330 + $0xe0] sm:$0xff]
        %v364 = vld [vmem:[%s330 + $0xe8] sm:$0xff]
        %v365 = vld [vmem:[%s330 + $0xf0] sm:$0xff]
        %v366 = vld [vmem:[%s330 + $0xf8] sm:$0xff]
        %v367 = vld [vmem:[%s2] sm:$0x1]
        %v368 = vpack.c.bf16 %v335, %v335
        %v369 = vpack.c.bf16 %v336, %v336
        %v370 = vpack.c.bf16 %v337, %v337
        %v371 = vpack.c.bf16 %v338, %v338
        %v372 = vpack.c.bf16 %v339, %v339
        %v373 = vpack.c.bf16 %v340, %v340
        %v374 = vpack.c.bf16 %v341, %v341
        %v375 = vpack.c.bf16 %v342, %v342
        %v376 = vpack.c.bf16 %v343, %v343
        %v377 = vpack.c.bf16 %v344, %v344
        %v378 = vpack.c.bf16 %v345, %v345
        %v379 = vpack.c.bf16 %v346, %v346
        %v380 = vpack.c.bf16 %v347, %v347
        %v381 = vpack.c.bf16 %v348, %v348
        %v382 = vpack.c.bf16 %v349, %v349
        %v383 = vpack.c.bf16 %v350, %v350
        %v384 = vpack.c.bf16 %v351, %v351
        %v385 = vpack.c.bf16 %v352, %v352
        %v386 = vpack.c.bf16 %v353, %v353
        %v387 = vpack.c.bf16 %v354, %v354
        %v388 = vpack.c.bf16 %v355, %v355
        %v389 = vpack.c.bf16 %v356, %v356
        %v390 = vpack.c.bf16 %v357, %v357
        %v391 = vpack.c.bf16 %v358, %v358
        %v392 = vpack.c.bf16 %v359, %v359
        %v393 = vpack.c.bf16 %v360, %v360
        %v394 = vpack.c.bf16 %v361, %v361
        %v395 = vpack.c.bf16 %v362, %v362
        %v396 = vpack.c.bf16 %v363, %v363
        %v397 = vpack.c.bf16 %v364, %v364
        %v398 = vpack.c.bf16 %v365, %v365
        %v399 = vpack.c.bf16 %v366, %v366
        %v432 = vunpack.c.l.b16 %v368
        %v433 = vunpack.c.l.b16 %v369
        %v434 = vunpack.c.l.b16 %v370
        %v435 = vunpack.c.l.b16 %v371
        %v436 = vunpack.c.l.b16 %v372
        %v437 = vunpack.c.l.b16 %v373
        %v438 = vunpack.c.l.b16 %v374
        %v439 = vunpack.c.l.b16 %v375
        %v440 = vunpack.c.l.b16 %v376
        %v441 = vunpack.c.l.b16 %v377
        %v442 = vunpack.c.l.b16 %v378
        %v443 = vunpack.c.l.b16 %v379
        %v444 = vunpack.c.l.b16 %v380
        %v445 = vunpack.c.l.b16 %v381
        %v446 = vunpack.c.l.b16 %v382
        %v447 = vunpack.c.l.b16 %v383
        %v448 = vunpack.c.l.b16 %v384
        %v449 = vunpack.c.l.b16 %v385
        %v450 = vunpack.c.l.b16 %v386
        %v451 = vunpack.c.l.b16 %v387
        %v452 = vunpack.c.l.b16 %v388
        %v453 = vunpack.c.l.b16 %v389
        %v454 = vunpack.c.l.b16 %v390
        %v455 = vunpack.c.l.b16 %v391
        %v456 = vunpack.c.l.b16 %v392
        %v457 = vunpack.c.l.b16 %v393
        %v458 = vunpack.c.l.b16 %v394
        %v459 = vunpack.c.l.b16 %v395
        %v460 = vunpack.c.l.b16 %v396
        %v461 = vunpack.c.l.b16 %v397
        %v462 = vunpack.c.l.b16 %v398
        %v463 = vunpack.c.l.b16 %v399
        %v464 = vpack.c.b16 %v433, %v432
        %v465 = vpack.c.b16 %v435, %v434
        %v466 = vpack.c.b16 %v437, %v436
        %v467 = vpack.c.b16 %v439, %v438
        %v468 = vpack.c.b16 %v441, %v440
        %v469 = vpack.c.b16 %v443, %v442
        %v470 = vpack.c.b16 %v445, %v444
        %v471 = vpack.c.b16 %v447, %v446
        %v472 = vpack.c.b16 %v449, %v448
        %v473 = vpack.c.b16 %v451, %v450
        %v474 = vpack.c.b16 %v453, %v452
        %v475 = vpack.c.b16 %v455, %v454
        %v476 = vpack.c.b16 %v457, %v456
        %v477 = vpack.c.b16 %v459, %v458
        %v478 = vpack.c.b16 %v461, %v460
        %v479 = vpack.c.b16 %v463, %v462
        %480 = vrot.lane.b32.xlu0 %v464, 32
        %v481 = vpop.permute.xlu0 %480
        %482 = vrot.lane.b32.xlu0 %v465, 32
        %v483 = vpop.permute.xlu0 %482
        %484 = vrot.lane.b32.xlu0 %v466, 32
        %v485 = vpop.permute.xlu0 %484
        %486 = vrot.lane.b32.xlu0 %v467, 32
        %v487 = vpop.permute.xlu0 %486
        %488 = vrot.lane.b32.xlu0 %v468, 32
        %v489 = vpop.permute.xlu0 %488
        %490 = vrot.lane.b32.xlu0 %v469, 32
        %v491 = vpop.permute.xlu0 %490
        %492 = vrot.lane.b32.xlu0 %v470, 32
        %v493 = vpop.permute.xlu0 %492
        %494 = vrot.lane.b32.xlu0 %v471, 32
        %v495 = vpop.permute.xlu0 %494
        %496 = vrot.lane.b32.xlu0 %v472, 32
        %v497 = vpop.permute.xlu0 %496
        %498 = vrot.lane.b32.xlu0 %v473, 32
        %v499 = vpop.permute.xlu0 %498
        %500 = vrot.lane.b32.xlu0 %v474, 32
        %v501 = vpop.permute.xlu0 %500
        %502 = vrot.lane.b32.xlu0 %v475, 32
        %v503 = vpop.permute.xlu0 %502
        %504 = vrot.lane.b32.xlu0 %v476, 32
        %v505 = vpop.permute.xlu0 %504
        %506 = vrot.lane.b32.xlu0 %v477, 32
        %v507 = vpop.permute.xlu0 %506
        %508 = vrot.lane.b32.xlu0 %v478, 32
        %v509 = vpop.permute.xlu0 %508
        %510 = vrot.lane.b32.xlu0 %v479, 32
        %v511 = vpop.permute.xlu0 %510
        %513 = vrot.lane.b32.xlu0 %v465, 64
        %v514 = vpop.permute.xlu0 %513
        %515 = vrot.lane.b32.xlu0 %v466, 64
        %v516 = vpop.permute.xlu0 %515
        %517 = vrot.lane.b32.xlu0 %v467, 64
        %v518 = vpop.permute.xlu0 %517
        %519 = vrot.lane.b32.xlu0 %v468, 64
        %v520 = vpop.permute.xlu0 %519
        %521 = vrot.lane.b32.xlu0 %v469, 64
        %v522 = vpop.permute.xlu0 %521
        %523 = vrot.lane.b32.xlu0 %v470, 64
        %v524 = vpop.permute.xlu0 %523
        %525 = vrot.lane.b32.xlu0 %v471, 64
        %v526 = vpop.permute.xlu0 %525
        %527 = vrot.lane.b32.xlu0 %v472, 64
        %v528 = vpop.permute.xlu0 %527
        %529 = vrot.lane.b32.xlu0 %v473, 64
        %v530 = vpop.permute.xlu0 %529
        %531 = vrot.lane.b32.xlu0 %v474, 64
        %v532 = vpop.permute.xlu0 %531
        %533 = vrot.lane.b32.xlu0 %v475, 64
        %v534 = vpop.permute.xlu0 %533
        %535 = vrot.lane.b32.xlu0 %v476, 64
        %v536 = vpop.permute.xlu0 %535
        %537 = vrot.lane.b32.xlu0 %v477, 64
        %v538 = vpop.permute.xlu0 %537
        %539 = vrot.lane.b32.xlu0 %v478, 64
        %v540 = vpop.permute.xlu0 %539
        %541 = vrot.lane.b32.xlu0 %v479, 64
        %v542 = vpop.permute.xlu0 %541
        %543 = vrot.lane.b32.xlu0 0, 64
        %v544 = vpop.permute.xlu0 %543
        %vm545 = vcmask 261120
        %v548 = vsel %vm545, 0, %v481
        %v551 = vsel %vm545, %v464, %v483
        %v554 = vsel %vm545, %v465, %v485
        %v557 = vsel %vm545, %v466, %v487
        %v560 = vsel %vm545, %v467, %v489
        %v563 = vsel %vm545, %v468, %v491
        %v566 = vsel %vm545, %v469, %v493
        %v569 = vsel %vm545, %v470, %v495
        %v572 = vsel %vm545, %v471, %v497
        %v575 = vsel %vm545, %v472, %v499
        %v578 = vsel %vm545, %v473, %v501
        %v581 = vsel %vm545, %v474, %v503
        %v584 = vsel %vm545, %v475, %v505
        %v587 = vsel %vm545, %v476, %v507
        %v590 = vsel %vm545, %v477, %v509
        %v593 = vsel %vm545, %v478, %v511
        %vm594 = vcmask 523264
        %v596 = vsel %vm594, %v548, %v514
        %v598 = vsel %vm594, %v551, %v516
        %v600 = vsel %vm594, %v554, %v518
        %v602 = vsel %vm594, %v557, %v520
        %v604 = vsel %vm594, %v560, %v522
        %v606 = vsel %vm594, %v563, %v524
        %v608 = vsel %vm594, %v566, %v526
        %v610 = vsel %vm594, %v569, %v528
        %v612 = vsel %vm594, %v572, %v530
        %v614 = vsel %vm594, %v575, %v532
        %v616 = vsel %vm594, %v578, %v534
        %v618 = vsel %vm594, %v581, %v536
        %v620 = vsel %vm594, %v584, %v538
        %v622 = vsel %vm594, %v587, %v540
        %v624 = vsel %vm594, %v590, %v542
        %v626 = vsel %vm594, %v593, %v544
        %v627 = vld [vmem:[%s1] sm:$0xf]
        %v628 = vld [vmem:[%s1 + $0x4] sm:$0xf]
        %v629 = vld [vmem:[%s1 + $0x8] sm:$0xf]
        %v630 = vld [vmem:[%s1 + $0xc] sm:$0xf]
        %v631 = vld [vmem:[%s1 + $0x10] sm:$0xf]
        %v632 = vld [vmem:[%s1 + $0x14] sm:$0xf]
        %v633 = vld [vmem:[%s1 + $0x18] sm:$0xf]
        %v634 = vld [vmem:[%s1 + $0x1c] sm:$0xf]
        %v635 = vld [vmem:[%s1 + $0x20] sm:$0xf]
        %v636 = vld [vmem:[%s1 + $0x24] sm:$0xf]
        %v637 = vld [vmem:[%s1 + $0x28] sm:$0xf]
        %v638 = vld [vmem:[%s1 + $0x2c] sm:$0xf]
        %v651 = vunpack.c.l.b16 %v627
        %v652 = vunpack.c.l.b16 %v628
        %v653 = vunpack.c.l.b16 %v629
        %v654 = vunpack.c.l.b16 %v630
        %v655 = vunpack.c.l.b16 %v631
        %v656 = vunpack.c.l.b16 %v632
        %v657 = vunpack.c.l.b16 %v633
        %v658 = vunpack.c.l.b16 %v634
        %v659 = vunpack.c.l.b16 %v635
        %v660 = vunpack.c.l.b16 %v636
        %v661 = vunpack.c.l.b16 %v637
        %v662 = vunpack.c.l.b16 %v638
        %v663 = vpack.c.b16 %v652, %v651
        %v664 = vpack.c.b16 %v654, %v653
        %v665 = vpack.c.b16 %v656, %v655
        %v666 = vpack.c.b16 %v658, %v657
        %v667 = vpack.c.b16 %v660, %v659
        %v668 = vpack.c.b16 %v662, %v661
        %vm675 = vcmask 785408
        %v676 = vsel %vm675, %v596, 0
        %v678 = vsel %vm675, %v598, 0
        %v680 = vsel %vm675, %v600, 0
        %v682 = vsel %vm675, %v602, 0
        %v684 = vsel %vm675, %v604, 0
        %v686 = vsel %vm675, %v606, 0
        %v688 = vsel %vm675, %v608, 0
        %v690 = vsel %vm675, %v610, 0
        %v692 = vsel %vm675, %v612, 0
        %v694 = vsel %vm675, %v614, 0
        %v696 = vsel %vm675, %v616, 0
        %v698 = vsel %vm675, %v618, 0
        %v700 = vsel %vm675, %v620, 0
        %v702 = vsel %vm675, %v622, 0
        %v704 = vsel %vm675, %v624, 0
        %v706 = vsel %vm675, %v626, 0
        %708 = vmatpush.bf16.msra.mxu0 0
        %709 = vmatpush.bf16.msra.mxu0 0
        %710 = vmatpush.bf16.msra.mxu0 %v668
        %711 = vmatpush.bf16.msra.mxu0 %v667
        %712 = vmatpush.bf16.msra.mxu0 %v666
        %713 = vmatpush.bf16.msra.mxu0 %v665
        %714 = vmatpush.bf16.msra.mxu0 %v664
        %715 = vmatpush.bf16.msra.mxu0 %v663
        %716 = vmatmul.bf16.gmra.mxu0 %v676
        %v717 = vpop.f32.mrf.mxu0
        %v718 = vadd.f32 0.0, %v717
        %v719 = vpop.f32.mrf.mxu0
        %v720 = vadd.f32 0.0, %v719
        %721 = vmatmul.bf16.gmra.mxu0 %v678
        %v722 = vpop.f32.mrf.mxu0
        %v723 = vadd.f32 0.0, %v722
        %v724 = vpop.f32.mrf.mxu0
        %v725 = vadd.f32 0.0, %v724
        %726 = vmatmul.bf16.gmra.mxu0 %v680
        %v727 = vpop.f32.mrf.mxu0
        %v728 = vadd.f32 0.0, %v727
        %v729 = vpop.f32.mrf.mxu0
        %v730 = vadd.f32 0.0, %v729
        %731 = vmatmul.bf16.gmra.mxu0 %v682
        %v732 = vpop.f32.mrf.mxu0
        %v733 = vadd.f32 0.0, %v732
        %v734 = vpop.f32.mrf.mxu0
        %v735 = vadd.f32 0.0, %v734
        %736 = vmatmul.bf16.gmra.mxu0 %v684
        %v737 = vpop.f32.mrf.mxu0
        %v738 = vadd.f32 0.0, %v737
        %v739 = vpop.f32.mrf.mxu0
        %v740 = vadd.f32 0.0, %v739
        %741 = vmatmul.bf16.gmra.mxu0 %v686
        %v742 = vpop.f32.mrf.mxu0
        %v743 = vadd.f32 0.0, %v742
        %v744 = vpop.f32.mrf.mxu0
        %v745 = vadd.f32 0.0, %v744
        %746 = vmatmul.bf16.gmra.mxu0 %v688
        %v747 = vpop.f32.mrf.mxu0
        %v748 = vadd.f32 0.0, %v747
        %v749 = vpop.f32.mrf.mxu0
        %v750 = vadd.f32 0.0, %v749
        %751 = vmatmul.bf16.gmra.mxu0 %v690
        %v752 = vpop.f32.mrf.mxu0
        %v753 = vadd.f32 0.0, %v752
        %v754 = vpop.f32.mrf.mxu0
        %v755 = vadd.f32 0.0, %v754
        %756 = vmatmul.bf16.gmra.mxu0 %v692
        %v757 = vpop.f32.mrf.mxu0
        %v758 = vadd.f32 0.0, %v757
        %v759 = vpop.f32.mrf.mxu0
        %v760 = vadd.f32 0.0, %v759
        %761 = vmatmul.bf16.gmra.mxu0 %v694
        %v762 = vpop.f32.mrf.mxu0
        %v763 = vadd.f32 0.0, %v762
        %v764 = vpop.f32.mrf.mxu0
        %v765 = vadd.f32 0.0, %v764
        %766 = vmatmul.bf16.gmra.mxu0 %v696
        %v767 = vpop.f32.mrf.mxu0
        %v768 = vadd.f32 0.0, %v767
        %v769 = vpop.f32.mrf.mxu0
        %v770 = vadd.f32 0.0, %v769
        %771 = vmatmul.bf16.gmra.mxu0 %v698
        %v772 = vpop.f32.mrf.mxu0
        %v773 = vadd.f32 0.0, %v772
        %v774 = vpop.f32.mrf.mxu0
        %v775 = vadd.f32 0.0, %v774
        %776 = vmatmul.bf16.gmra.mxu0 %v700
        %v777 = vpop.f32.mrf.mxu0
        %v778 = vadd.f32 0.0, %v777
        %v779 = vpop.f32.mrf.mxu0
        %v780 = vadd.f32 0.0, %v779
        %781 = vmatmul.bf16.gmra.mxu0 %v702
        %v782 = vpop.f32.mrf.mxu0
        %v783 = vadd.f32 0.0, %v782
        %v784 = vpop.f32.mrf.mxu0
        %v785 = vadd.f32 0.0, %v784
        %786 = vmatmul.bf16.gmra.mxu0 %v704
        %v787 = vpop.f32.mrf.mxu0
        %v788 = vadd.f32 0.0, %v787
        %v789 = vpop.f32.mrf.mxu0
        %v790 = vadd.f32 0.0, %v789
        %791 = vmatmul.bf16.gmra.mxu0 %v706
        %v792 = vpop.f32.mrf.mxu0
        %v793 = vadd.f32 0.0, %v792
        %v794 = vpop.f32.mrf.mxu0
        %v795 = vadd.f32 0.0, %v794
        %796 = vdwg.mxu0
        %vm797 = vcmp.gt.s32.totalorder %v333, 0
        %vm798 = vcmp.gt.s32.totalorder %v334, 0
        %v799 = vrot.slane %v718, 7
        %v800 = vrot.slane %v723, 7
        %v801 = vrot.slane %v728, 7
        %v802 = vrot.slane %v733, 7
        %v803 = vrot.slane %v738, 7
        %v804 = vrot.slane %v743, 7
        %v805 = vrot.slane %v748, 7
        %v806 = vrot.slane %v753, 7
        %v807 = vrot.slane %v758, 7
        %v808 = vrot.slane %v763, 7
        %v809 = vrot.slane %v768, 7
        %v810 = vrot.slane %v773, 7
        %v811 = vrot.slane %v778, 7
        %v812 = vrot.slane %v783, 7
        %v813 = vrot.slane %v788, 7
        %v814 = vrot.slane %v793, 7
        %v815 = vrot.slane %v720, 7
        %v816 = vrot.slane %v725, 7
        %v817 = vrot.slane %v730, 7
        %v818 = vrot.slane %v735, 7
        %v819 = vrot.slane %v740, 7
        %v820 = vrot.slane %v745, 7
        %v821 = vrot.slane %v750, 7
        %v822 = vrot.slane %v755, 7
        %v823 = vrot.slane %v760, 7
        %v824 = vrot.slane %v765, 7
        %v825 = vrot.slane %v770, 7
        %v826 = vrot.slane %v775, 7
        %v827 = vrot.slane %v780, 7
        %v828 = vrot.slane %v785, 7
        %v829 = vrot.slane %v790, 7
        %v830 = vrot.slane %v795, 7
        %vm831 = vcmp.lt.s32.totalorder %v333, 1
        %v832 = vsel %vm831, %v799, %v815
        %v833 = vsel %vm831, %v800, %v816
        %v834 = vsel %vm831, %v801, %v817
        %v835 = vsel %vm831, %v802, %v818
        %v836 = vsel %vm831, %v803, %v819
        %v837 = vsel %vm831, %v804, %v820
        %v838 = vsel %vm831, %v805, %v821
        %v839 = vsel %vm831, %v806, %v822
        %v840 = vsel %vm831, %v807, %v823
        %v841 = vsel %vm831, %v808, %v824
        %v842 = vsel %vm831, %v809, %v825
        %v843 = vsel %vm831, %v810, %v826
        %v844 = vsel %vm831, %v811, %v827
        %v845 = vsel %vm831, %v812, %v828
        %v846 = vsel %vm831, %v813, %v829
        %v847 = vsel %vm831, %v814, %v830
        %v848 = vsel %vm831, %v815, %v799
        %v849 = vsel %vm831, %v816, %v800
        %v850 = vsel %vm831, %v817, %v801
        %v851 = vsel %vm831, %v818, %v802
        %v852 = vsel %vm831, %v819, %v803
        %v853 = vsel %vm831, %v820, %v804
        %v854 = vsel %vm831, %v821, %v805
        %v855 = vsel %vm831, %v822, %v806
        %v856 = vsel %vm831, %v823, %v807
        %v857 = vsel %vm831, %v824, %v808
        %v858 = vsel %vm831, %v825, %v809
        %v859 = vsel %vm831, %v826, %v810
        %v860 = vsel %vm831, %v827, %v811
        %v861 = vsel %vm831, %v828, %v812
        %v862 = vsel %vm831, %v829, %v813
        %v863 = vsel %vm831, %v830, %v814
        %v864 = vsel %vm797, %v848, 0.0
        %v865 = vsel %vm798, %v832, 0.0
        %v866 = vsel %vm797, %v849, 0.0
        %v867 = vsel %vm798, %v833, 0.0
        %v868 = vsel %vm797, %v850, 0.0
        %v869 = vsel %vm798, %v834, 0.0
        %v870 = vsel %vm797, %v851, 0.0
        %v871 = vsel %vm798, %v835, 0.0
        %v872 = vsel %vm797, %v852, 0.0
        %v873 = vsel %vm798, %v836, 0.0
        %v874 = vsel %vm797, %v853, 0.0
        %v875 = vsel %vm798, %v837, 0.0
        %v876 = vsel %vm797, %v854, 0.0
        %v877 = vsel %vm798, %v838, 0.0
        %v878 = vsel %vm797, %v855, 0.0
        %v879 = vsel %vm798, %v839, 0.0
        %v880 = vsel %vm797, %v856, 0.0
        %v881 = vsel %vm798, %v840, 0.0
        %v882 = vsel %vm797, %v857, 0.0
        %v883 = vsel %vm798, %v841, 0.0
        %v884 = vsel %vm797, %v858, 0.0
        %v885 = vsel %vm798, %v842, 0.0
        %v886 = vsel %vm797, %v859, 0.0
        %v887 = vsel %vm798, %v843, 0.0
        %v888 = vsel %vm797, %v860, 0.0
        %v889 = vsel %vm798, %v844, 0.0
        %v890 = vsel %vm797, %v861, 0.0
        %v891 = vsel %vm798, %v845, 0.0
        %v892 = vsel %vm797, %v862, 0.0
        %v893 = vsel %vm798, %v846, 0.0
        %v894 = vsel %vm797, %v863, 0.0
        %v895 = vsel %vm798, %v847, 0.0
        %vm896 = vcmp.lt.s32.totalorder %v333, 15
        %vm897 = vcmp.lt.s32.totalorder %v334, 15
        %930 = vrot.lane.b32.xlu0 %v718, 64
        %v931 = vpop.permute.xlu0 %930
        %932 = vrot.lane.b32.xlu0 %v720, 64
        %v933 = vpop.permute.xlu0 %932
        %934 = vrot.lane.b32.xlu0 %v723, 64
        %v935 = vpop.permute.xlu0 %934
        %936 = vrot.lane.b32.xlu0 %v725, 64
        %v937 = vpop.permute.xlu0 %936
        %938 = vrot.lane.b32.xlu0 %v728, 64
        %v939 = vpop.permute.xlu0 %938
        %940 = vrot.lane.b32.xlu0 %v730, 64
        %v941 = vpop.permute.xlu0 %940
        %942 = vrot.lane.b32.xlu0 %v733, 64
        %v943 = vpop.permute.xlu0 %942
        %944 = vrot.lane.b32.xlu0 %v735, 64
        %v945 = vpop.permute.xlu0 %944
        %946 = vrot.lane.b32.xlu0 %v738, 64
        %v947 = vpop.permute.xlu0 %946
        %948 = vrot.lane.b32.xlu0 %v740, 64
        %v949 = vpop.permute.xlu0 %948
        %950 = vrot.lane.b32.xlu0 %v743, 64
        %v951 = vpop.permute.xlu0 %950
        %952 = vrot.lane.b32.xlu0 %v745, 64
        %v953 = vpop.permute.xlu0 %952
        %954 = vrot.lane.b32.xlu0 %v748, 64
        %v955 = vpop.permute.xlu0 %954
        %956 = vrot.lane.b32.xlu0 %v750, 64
        %v957 = vpop.permute.xlu0 %956
        %958 = vrot.lane.b32.xlu0 %v753, 64
        %v959 = vpop.permute.xlu0 %958
        %960 = vrot.lane.b32.xlu0 %v755, 64
        %v961 = vpop.permute.xlu0 %960
        %962 = vrot.lane.b32.xlu0 %v758, 64
        %v963 = vpop.permute.xlu0 %962
        %964 = vrot.lane.b32.xlu0 %v760, 64
        %v965 = vpop.permute.xlu0 %964
        %966 = vrot.lane.b32.xlu0 %v763, 64
        %v967 = vpop.permute.xlu0 %966
        %968 = vrot.lane.b32.xlu0 %v765, 64
        %v969 = vpop.permute.xlu0 %968
        %970 = vrot.lane.b32.xlu0 %v768, 64
        %v971 = vpop.permute.xlu0 %970
        %972 = vrot.lane.b32.xlu0 %v770, 64
        %v973 = vpop.permute.xlu0 %972
        %974 = vrot.lane.b32.xlu0 %v773, 64
        %v975 = vpop.permute.xlu0 %974
        %976 = vrot.lane.b32.xlu0 %v775, 64
        %v977 = vpop.permute.xlu0 %976
        %978 = vrot.lane.b32.xlu0 %v778, 64
        %v979 = vpop.permute.xlu0 %978
        %980 = vrot.lane.b32.xlu0 %v780, 64
        %v981 = vpop.permute.xlu0 %980
        %982 = vrot.lane.b32.xlu0 %v783, 64
        %v983 = vpop.permute.xlu0 %982
        %984 = vrot.lane.b32.xlu0 %v785, 64
        %v985 = vpop.permute.xlu0 %984
        %986 = vrot.lane.b32.xlu0 %v788, 64
        %v987 = vpop.permute.xlu0 %986
        %988 = vrot.lane.b32.xlu0 %v790, 64
        %v989 = vpop.permute.xlu0 %988
        %990 = vrot.lane.b32.xlu0 %v793, 64
        %v991 = vpop.permute.xlu0 %990
        %992 = vrot.lane.b32.xlu0 %v795, 64
        %v993 = vpop.permute.xlu0 %992
        %v1026 = vrot.slane %v931, 1
        %v1027 = vrot.slane %v935, 1
        %v1028 = vrot.slane %v939, 1
        %v1029 = vrot.slane %v943, 1
        %v1030 = vrot.slane %v947, 1
        %v1031 = vrot.slane %v951, 1
        %v1032 = vrot.slane %v955, 1
        %v1033 = vrot.slane %v959, 1
        %v1034 = vrot.slane %v963, 1
        %v1035 = vrot.slane %v967, 1
        %v1036 = vrot.slane %v971, 1
        %v1037 = vrot.slane %v975, 1
        %v1038 = vrot.slane %v979, 1
        %v1039 = vrot.slane %v983, 1
        %v1040 = vrot.slane %v987, 1
        %v1041 = vrot.slane %v991, 1
        %v1042 = vrot.slane %v933, 1
        %v1043 = vrot.slane %v937, 1
        %v1044 = vrot.slane %v941, 1
        %v1045 = vrot.slane %v945, 1
        %v1046 = vrot.slane %v949, 1
        %v1047 = vrot.slane %v953, 1
        %v1048 = vrot.slane %v957, 1
        %v1049 = vrot.slane %v961, 1
        %v1050 = vrot.slane %v965, 1
        %v1051 = vrot.slane %v969, 1
        %v1052 = vrot.slane %v973, 1
        %v1053 = vrot.slane %v977, 1
        %v1054 = vrot.slane %v981, 1
        %v1055 = vrot.slane %v985, 1
        %v1056 = vrot.slane %v989, 1
        %v1057 = vrot.slane %v993, 1
        %vm1058 = vcmp.lt.s32.totalorder %v333, 7
        %v1059 = vsel %vm1058, %v1026, %v1042
        %v1060 = vsel %vm1058, %v1027, %v1043
        %v1061 = vsel %vm1058, %v1028, %v1044
        %v1062 = vsel %vm1058, %v1029, %v1045
        %v1063 = vsel %vm1058, %v1030, %v1046
        %v1064 = vsel %vm1058, %v1031, %v1047
        %v1065 = vsel %vm1058, %v1032, %v1048
        %v1066 = vsel %vm1058, %v1033, %v1049
        %v1067 = vsel %vm1058, %v1034, %v1050
        %v1068 = vsel %vm1058, %v1035, %v1051
        %v1069 = vsel %vm1058, %v1036, %v1052
        %v1070 = vsel %vm1058, %v1037, %v1053
        %v1071 = vsel %vm1058, %v1038, %v1054
        %v1072 = vsel %vm1058, %v1039, %v1055
        %v1073 = vsel %vm1058, %v1040, %v1056
        %v1074 = vsel %vm1058, %v1041, %v1057
        %v1075 = vsel %vm1058, %v1042, %v1026
        %v1076 = vsel %vm1058, %v1043, %v1027
        %v1077 = vsel %vm1058, %v1044, %v1028
        %v1078 = vsel %vm1058, %v1045, %v1029
        %v1079 = vsel %vm1058, %v1046, %v1030
        %v1080 = vsel %vm1058, %v1047, %v1031
        %v1081 = vsel %vm1058, %v1048, %v1032
        %v1082 = vsel %vm1058, %v1049, %v1033
        %v1083 = vsel %vm1058, %v1050, %v1034
        %v1084 = vsel %vm1058, %v1051, %v1035
        %v1085 = vsel %vm1058, %v1052, %v1036
        %v1086 = vsel %vm1058, %v1053, %v1037
        %v1087 = vsel %vm1058, %v1054, %v1038
        %v1088 = vsel %vm1058, %v1055, %v1039
        %v1089 = vsel %vm1058, %v1056, %v1040
        %v1090 = vsel %vm1058, %v1057, %v1041
        %v1091 = vsel %vm896, %v1059, 0.0
        %v1092 = vsel %vm897, %v1075, 0.0
        %v1093 = vsel %vm896, %v1060, 0.0
        %v1094 = vsel %vm897, %v1076, 0.0
        %v1095 = vsel %vm896, %v1061, 0.0
        %v1096 = vsel %vm897, %v1077, 0.0
        %v1097 = vsel %vm896, %v1062, 0.0
        %v1098 = vsel %vm897, %v1078, 0.0
        %v1099 = vsel %vm896, %v1063, 0.0
        %v1100 = vsel %vm897, %v1079, 0.0
        %v1101 = vsel %vm896, %v1064, 0.0
        %v1102 = vsel %vm897, %v1080, 0.0
        %v1103 = vsel %vm896, %v1065, 0.0
        %v1104 = vsel %vm897, %v1081, 0.0
        %v1105 = vsel %vm896, %v1066, 0.0
        %v1106 = vsel %vm897, %v1082, 0.0
        %v1107 = vsel %vm896, %v1067, 0.0
        %v1108 = vsel %vm897, %v1083, 0.0
        %v1109 = vsel %vm896, %v1068, 0.0
        %v1110 = vsel %vm897, %v1084, 0.0
        %v1111 = vsel %vm896, %v1069, 0.0
        %v1112 = vsel %vm897, %v1085, 0.0
        %v1113 = vsel %vm896, %v1070, 0.0
        %v1114 = vsel %vm897, %v1086, 0.0
        %v1115 = vsel %vm896, %v1071, 0.0
        %v1116 = vsel %vm897, %v1087, 0.0
        %v1117 = vsel %vm896, %v1072, 0.0
        %v1118 = vsel %vm897, %v1088, 0.0
        %v1119 = vsel %vm896, %v1073, 0.0
        %v1120 = vsel %vm897, %v1089, 0.0
        %v1121 = vsel %vm896, %v1074, 0.0
        %v1122 = vsel %vm897, %v1090, 0.0
        %1155 = vrot.lane.b32.xlu0 %v864, 32
        %v1156 = vpop.permute.xlu0 %1155
        %1157 = vrot.lane.b32.xlu0 %v865, 32
        %v1158 = vpop.permute.xlu0 %1157
        %1159 = vrot.lane.b32.xlu0 %v866, 32
        %v1160 = vpop.permute.xlu0 %1159
        %1161 = vrot.lane.b32.xlu0 %v867, 32
        %v1162 = vpop.permute.xlu0 %1161
        %1163 = vrot.lane.b32.xlu0 %v868, 32
        %v1164 = vpop.permute.xlu0 %1163
        %1165 = vrot.lane.b32.xlu0 %v869, 32
        %v1166 = vpop.permute.xlu0 %1165
        %1167 = vrot.lane.b32.xlu0 %v870, 32
        %v1168 = vpop.permute.xlu0 %1167
        %1169 = vrot.lane.b32.xlu0 %v871, 32
        %v1170 = vpop.permute.xlu0 %1169
        %1171 = vrot.lane.b32.xlu0 %v872, 32
        %v1172 = vpop.permute.xlu0 %1171
        %1173 = vrot.lane.b32.xlu0 %v873, 32
        %v1174 = vpop.permute.xlu0 %1173
        %1175 = vrot.lane.b32.xlu0 %v874, 32
        %v1176 = vpop.permute.xlu0 %1175
        %1177 = vrot.lane.b32.xlu0 %v875, 32
        %v1178 = vpop.permute.xlu0 %1177
        %1179 = vrot.lane.b32.xlu0 %v876, 32
        %v1180 = vpop.permute.xlu0 %1179
        %1181 = vrot.lane.b32.xlu0 %v877, 32
        %v1182 = vpop.permute.xlu0 %1181
        %1183 = vrot.lane.b32.xlu0 %v878, 32
        %v1184 = vpop.permute.xlu0 %1183
        %1185 = vrot.lane.b32.xlu0 %v879, 32
        %v1186 = vpop.permute.xlu0 %1185
        %1187 = vrot.lane.b32.xlu0 %v880, 32
        %v1188 = vpop.permute.xlu0 %1187
        %1189 = vrot.lane.b32.xlu0 %v881, 32
        %v1190 = vpop.permute.xlu0 %1189
        %1191 = vrot.lane.b32.xlu0 %v882, 32
        %v1192 = vpop.permute.xlu0 %1191
        %1193 = vrot.lane.b32.xlu0 %v883, 32
        %v1194 = vpop.permute.xlu0 %1193
        %1195 = vrot.lane.b32.xlu0 %v884, 32
        %v1196 = vpop.permute.xlu0 %1195
        %1197 = vrot.lane.b32.xlu0 %v885, 32
        %v1198 = vpop.permute.xlu0 %1197
        %1199 = vrot.lane.b32.xlu0 %v886, 32
        %v1200 = vpop.permute.xlu0 %1199
        %1201 = vrot.lane.b32.xlu0 %v887, 32
        %v1202 = vpop.permute.xlu0 %1201
        %1203 = vrot.lane.b32.xlu0 %v888, 32
        %v1204 = vpop.permute.xlu0 %1203
        %1205 = vrot.lane.b32.xlu0 %v889, 32
        %v1206 = vpop.permute.xlu0 %1205
        %1207 = vrot.lane.b32.xlu0 %v890, 32
        %v1208 = vpop.permute.xlu0 %1207
        %1209 = vrot.lane.b32.xlu0 %v891, 32
        %v1210 = vpop.permute.xlu0 %1209
        %1211 = vrot.lane.b32.xlu0 %v892, 32
        %v1212 = vpop.permute.xlu0 %1211
        %1213 = vrot.lane.b32.xlu0 %v893, 32
        %v1214 = vpop.permute.xlu0 %1213
        %1215 = vrot.lane.b32.xlu0 %v894, 32
        %v1216 = vpop.permute.xlu0 %1215
        %1217 = vrot.lane.b32.xlu0 %v895, 32
        %v1218 = vpop.permute.xlu0 %1217
        %v1251 = vadd.f32 %v718, %v1156
        %v1252 = vadd.f32 %v720, %v1158
        %v1253 = vadd.f32 %v723, %v1160
        %v1254 = vadd.f32 %v725, %v1162
        %v1255 = vadd.f32 %v728, %v1164
        %v1256 = vadd.f32 %v730, %v1166
        %v1257 = vadd.f32 %v733, %v1168
        %v1258 = vadd.f32 %v735, %v1170
        %v1259 = vadd.f32 %v738, %v1172
        %v1260 = vadd.f32 %v740, %v1174
        %v1261 = vadd.f32 %v743, %v1176
        %v1262 = vadd.f32 %v745, %v1178
        %v1263 = vadd.f32 %v748, %v1180
        %v1264 = vadd.f32 %v750, %v1182
        %v1265 = vadd.f32 %v753, %v1184
        %v1266 = vadd.f32 %v755, %v1186
        %v1267 = vadd.f32 %v758, %v1188
        %v1268 = vadd.f32 %v760, %v1190
        %v1269 = vadd.f32 %v763, %v1192
        %v1270 = vadd.f32 %v765, %v1194
        %v1271 = vadd.f32 %v768, %v1196
        %v1272 = vadd.f32 %v770, %v1198
        %v1273 = vadd.f32 %v773, %v1200
        %v1274 = vadd.f32 %v775, %v1202
        %v1275 = vadd.f32 %v778, %v1204
        %v1276 = vadd.f32 %v780, %v1206
        %v1277 = vadd.f32 %v783, %v1208
        %v1278 = vadd.f32 %v785, %v1210
        %v1279 = vadd.f32 %v788, %v1212
        %v1280 = vadd.f32 %v790, %v1214
        %v1281 = vadd.f32 %v793, %v1216
        %v1282 = vadd.f32 %v795, %v1218
        %1315 = vrot.lane.b32.xlu0 %v1091, 32
        %v1316 = vpop.permute.xlu0 %1315
        %1317 = vrot.lane.b32.xlu0 %v1092, 32
        %v1318 = vpop.permute.xlu0 %1317
        %1319 = vrot.lane.b32.xlu0 %v1093, 32
        %v1320 = vpop.permute.xlu0 %1319
        %1321 = vrot.lane.b32.xlu0 %v1094, 32
        %v1322 = vpop.permute.xlu0 %1321
        %1323 = vrot.lane.b32.xlu0 %v1095, 32
        %v1324 = vpop.permute.xlu0 %1323
        %1325 = vrot.lane.b32.xlu0 %v1096, 32
        %v1326 = vpop.permute.xlu0 %1325
        %1327 = vrot.lane.b32.xlu0 %v1097, 32
        %v1328 = vpop.permute.xlu0 %1327
        %1329 = vrot.lane.b32.xlu0 %v1098, 32
        %v1330 = vpop.permute.xlu0 %1329
        %1331 = vrot.lane.b32.xlu0 %v1099, 32
        %v1332 = vpop.permute.xlu0 %1331
        %1333 = vrot.lane.b32.xlu0 %v1100, 32
        %v1334 = vpop.permute.xlu0 %1333
        %1335 = vrot.lane.b32.xlu0 %v1101, 32
        %v1336 = vpop.permute.xlu0 %1335
        %1337 = vrot.lane.b32.xlu0 %v1102, 32
        %v1338 = vpop.permute.xlu0 %1337
        %1339 = vrot.lane.b32.xlu0 %v1103, 32
        %v1340 = vpop.permute.xlu0 %1339
        %1341 = vrot.lane.b32.xlu0 %v1104, 32
        %v1342 = vpop.permute.xlu0 %1341
        %1343 = vrot.lane.b32.xlu0 %v1105, 32
        %v1344 = vpop.permute.xlu0 %1343
        %1345 = vrot.lane.b32.xlu0 %v1106, 32
        %v1346 = vpop.permute.xlu0 %1345
        %1347 = vrot.lane.b32.xlu0 %v1107, 32
        %v1348 = vpop.permute.xlu0 %1347
        %1349 = vrot.lane.b32.xlu0 %v1108, 32
        %v1350 = vpop.permute.xlu0 %1349
        %1351 = vrot.lane.b32.xlu0 %v1109, 32
        %v1352 = vpop.permute.xlu0 %1351
        %1353 = vrot.lane.b32.xlu0 %v1110, 32
        %v1354 = vpop.permute.xlu0 %1353
        %1355 = vrot.lane.b32.xlu0 %v1111, 32
        %v1356 = vpop.permute.xlu0 %1355
        %1357 = vrot.lane.b32.xlu0 %v1112, 32
        %v1358 = vpop.permute.xlu0 %1357
        %1359 = vrot.lane.b32.xlu0 %v1113, 32
        %v1360 = vpop.permute.xlu0 %1359
        %1361 = vrot.lane.b32.xlu0 %v1114, 32
        %v1362 = vpop.permute.xlu0 %1361
        %1363 = vrot.lane.b32.xlu0 %v1115, 32
        %v1364 = vpop.permute.xlu0 %1363
        %1365 = vrot.lane.b32.xlu0 %v1116, 32
        %v1366 = vpop.permute.xlu0 %1365
        %1367 = vrot.lane.b32.xlu0 %v1117, 32
        %v1368 = vpop.permute.xlu0 %1367
        %1369 = vrot.lane.b32.xlu0 %v1118, 32
        %v1370 = vpop.permute.xlu0 %1369
        %1371 = vrot.lane.b32.xlu0 %v1119, 32
        %v1372 = vpop.permute.xlu0 %1371
        %1373 = vrot.lane.b32.xlu0 %v1120, 32
        %v1374 = vpop.permute.xlu0 %1373
        %1375 = vrot.lane.b32.xlu0 %v1121, 32
        %v1376 = vpop.permute.xlu0 %1375
        %1377 = vrot.lane.b32.xlu0 %v1122, 32
        %v1378 = vpop.permute.xlu0 %1377
        %v1411 = vadd.f32 %v1251, %v1316
        %v1412 = vadd.f32 %v1252, %v1318
        %v1413 = vadd.f32 %v1253, %v1320
        %v1414 = vadd.f32 %v1254, %v1322
        %v1415 = vadd.f32 %v1255, %v1324
        %v1416 = vadd.f32 %v1256, %v1326
        %v1417 = vadd.f32 %v1257, %v1328
        %v1418 = vadd.f32 %v1258, %v1330
        %v1419 = vadd.f32 %v1259, %v1332
        %v1420 = vadd.f32 %v1260, %v1334
        %v1421 = vadd.f32 %v1261, %v1336
        %v1422 = vadd.f32 %v1262, %v1338
        %v1423 = vadd.f32 %v1263, %v1340
        %v1424 = vadd.f32 %v1264, %v1342
        %v1425 = vadd.f32 %v1265, %v1344
        %v1426 = vadd.f32 %v1266, %v1346
        %v1427 = vadd.f32 %v1267, %v1348
        %v1428 = vadd.f32 %v1268, %v1350
        %v1429 = vadd.f32 %v1269, %v1352
        %v1430 = vadd.f32 %v1270, %v1354
        %v1431 = vadd.f32 %v1271, %v1356
        %v1432 = vadd.f32 %v1272, %v1358
        %v1433 = vadd.f32 %v1273, %v1360
        %v1434 = vadd.f32 %v1274, %v1362
        %v1435 = vadd.f32 %v1275, %v1364
        %v1436 = vadd.f32 %v1276, %v1366
        %v1437 = vadd.f32 %v1277, %v1368
        %v1438 = vadd.f32 %v1278, %v1370
        %v1439 = vadd.f32 %v1279, %v1372
        %v1440 = vadd.f32 %v1280, %v1374
        %v1441 = vadd.f32 %v1281, %v1376
        %v1442 = vadd.f32 %v1282, %v1378
        %v1444 = vperm.slane %v367, 0
        %1445 = vrot.lane.b32.xlu0 %v1444, 32
        %v1446 = vpop.permute.xlu0 %1445
        %v1448 = vadd.f32 %v1411, %v1446
        %v1449 = vadd.f32 %v1412, %v1446
        %v1450 = vadd.f32 %v1413, %v1446
        %v1451 = vadd.f32 %v1414, %v1446
        %v1452 = vadd.f32 %v1415, %v1446
        %v1453 = vadd.f32 %v1416, %v1446
        %v1454 = vadd.f32 %v1417, %v1446
        %v1455 = vadd.f32 %v1418, %v1446
        %v1456 = vadd.f32 %v1419, %v1446
        %v1457 = vadd.f32 %v1420, %v1446
        %v1458 = vadd.f32 %v1421, %v1446
        %v1459 = vadd.f32 %v1422, %v1446
        %v1460 = vadd.f32 %v1423, %v1446
        %v1461 = vadd.f32 %v1424, %v1446
        %v1462 = vadd.f32 %v1425, %v1446
        %v1463 = vadd.f32 %v1426, %v1446
        %v1464 = vadd.f32 %v1427, %v1446
        %v1465 = vadd.f32 %v1428, %v1446
        %v1466 = vadd.f32 %v1429, %v1446
        %v1467 = vadd.f32 %v1430, %v1446
        %v1468 = vadd.f32 %v1431, %v1446
        %v1469 = vadd.f32 %v1432, %v1446
        %v1470 = vadd.f32 %v1433, %v1446
        %v1471 = vadd.f32 %v1434, %v1446
        %v1472 = vadd.f32 %v1435, %v1446
        %v1473 = vadd.f32 %v1436, %v1446
        %v1474 = vadd.f32 %v1437, %v1446
        %v1475 = vadd.f32 %v1438, %v1446
        %v1476 = vadd.f32 %v1439, %v1446
        %v1477 = vadd.f32 %v1440, %v1446
        %v1478 = vadd.f32 %v1441, %v1446
        %v1479 = vadd.f32 %v1442, %v1446
        %v1480 = vmax.f32 %v1448, 0.0
        %v1481 = vmax.f32 %v1449, 0.0
        %v1482 = vmax.f32 %v1450, 0.0
        %v1483 = vmax.f32 %v1451, 0.0
        %v1484 = vmax.f32 %v1452, 0.0
        %v1485 = vmax.f32 %v1453, 0.0
        %v1486 = vmax.f32 %v1454, 0.0
        %v1487 = vmax.f32 %v1455, 0.0
        %v1488 = vmax.f32 %v1456, 0.0
        %v1489 = vmax.f32 %v1457, 0.0
        %v1490 = vmax.f32 %v1458, 0.0
        %v1491 = vmax.f32 %v1459, 0.0
        %v1492 = vmax.f32 %v1460, 0.0
        %v1493 = vmax.f32 %v1461, 0.0
        %v1494 = vmax.f32 %v1462, 0.0
        %v1495 = vmax.f32 %v1463, 0.0
        %v1496 = vmax.f32 %v1464, 0.0
        %v1497 = vmax.f32 %v1465, 0.0
        %v1498 = vmax.f32 %v1466, 0.0
        %v1499 = vmax.f32 %v1467, 0.0
        %v1500 = vmax.f32 %v1468, 0.0
        %v1501 = vmax.f32 %v1469, 0.0
        %v1502 = vmax.f32 %v1470, 0.0
        %v1503 = vmax.f32 %v1471, 0.0
        %v1504 = vmax.f32 %v1472, 0.0
        %v1505 = vmax.f32 %v1473, 0.0
        %v1506 = vmax.f32 %v1474, 0.0
        %v1507 = vmax.f32 %v1475, 0.0
        %v1508 = vmax.f32 %v1476, 0.0
        %v1509 = vmax.f32 %v1477, 0.0
        %v1510 = vmax.f32 %v1478, 0.0
        %v1511 = vmax.f32 %v1479, 0.0
        %v1512 = vld [vmem:[%s4] sm:$0x1]
        %v1513 = vpack.c.bf16 %v1480, %v1480
        %v1514 = vpack.c.bf16 %v1481, %v1481
        %v1515 = vpack.c.bf16 %v1482, %v1482
        %v1516 = vpack.c.bf16 %v1483, %v1483
        %v1517 = vpack.c.bf16 %v1484, %v1484
        %v1518 = vpack.c.bf16 %v1485, %v1485
        %v1519 = vpack.c.bf16 %v1486, %v1486
        %v1520 = vpack.c.bf16 %v1487, %v1487
        %v1521 = vpack.c.bf16 %v1488, %v1488
        %v1522 = vpack.c.bf16 %v1489, %v1489
        %v1523 = vpack.c.bf16 %v1490, %v1490
        %v1524 = vpack.c.bf16 %v1491, %v1491
        %v1525 = vpack.c.bf16 %v1492, %v1492
        %v1526 = vpack.c.bf16 %v1493, %v1493
        %v1527 = vpack.c.bf16 %v1494, %v1494
        %v1528 = vpack.c.bf16 %v1495, %v1495
        %v1529 = vpack.c.bf16 %v1496, %v1496
        %v1530 = vpack.c.bf16 %v1497, %v1497
        %v1531 = vpack.c.bf16 %v1498, %v1498
        %v1532 = vpack.c.bf16 %v1499, %v1499
        %v1533 = vpack.c.bf16 %v1500, %v1500
        %v1534 = vpack.c.bf16 %v1501, %v1501
        %v1535 = vpack.c.bf16 %v1502, %v1502
        %v1536 = vpack.c.bf16 %v1503, %v1503
        %v1537 = vpack.c.bf16 %v1504, %v1504
        %v1538 = vpack.c.bf16 %v1505, %v1505
        %v1539 = vpack.c.bf16 %v1506, %v1506
        %v1540 = vpack.c.bf16 %v1507, %v1507
        %v1541 = vpack.c.bf16 %v1508, %v1508
        %v1542 = vpack.c.bf16 %v1509, %v1509
        %v1543 = vpack.c.bf16 %v1510, %v1510
        %v1544 = vpack.c.bf16 %v1511, %v1511
        %v1577 = vunpack.c.l.b16 %v1513
        %v1578 = vunpack.c.l.b16 %v1514
        %v1579 = vunpack.c.l.b16 %v1515
        %v1580 = vunpack.c.l.b16 %v1516
        %v1581 = vunpack.c.l.b16 %v1517
        %v1582 = vunpack.c.l.b16 %v1518
        %v1583 = vunpack.c.l.b16 %v1519
        %v1584 = vunpack.c.l.b16 %v1520
        %v1585 = vunpack.c.l.b16 %v1521
        %v1586 = vunpack.c.l.b16 %v1522
        %v1587 = vunpack.c.l.b16 %v1523
        %v1588 = vunpack.c.l.b16 %v1524
        %v1589 = vunpack.c.l.b16 %v1525
        %v1590 = vunpack.c.l.b16 %v1526
        %v1591 = vunpack.c.l.b16 %v1527
        %v1592 = vunpack.c.l.b16 %v1528
        %v1593 = vunpack.c.l.b16 %v1529
        %v1594 = vunpack.c.l.b16 %v1530
        %v1595 = vunpack.c.l.b16 %v1531
        %v1596 = vunpack.c.l.b16 %v1532
        %v1597 = vunpack.c.l.b16 %v1533
        %v1598 = vunpack.c.l.b16 %v1534
        %v1599 = vunpack.c.l.b16 %v1535
        %v1600 = vunpack.c.l.b16 %v1536
        %v1601 = vunpack.c.l.b16 %v1537
        %v1602 = vunpack.c.l.b16 %v1538
        %v1603 = vunpack.c.l.b16 %v1539
        %v1604 = vunpack.c.l.b16 %v1540
        %v1605 = vunpack.c.l.b16 %v1541
        %v1606 = vunpack.c.l.b16 %v1542
        %v1607 = vunpack.c.l.b16 %v1543
        %v1608 = vunpack.c.l.b16 %v1544
        %v1609 = vpack.c.b16 %v1578, %v1577
        %v1610 = vpack.c.b16 %v1580, %v1579
        %v1611 = vpack.c.b16 %v1582, %v1581
        %v1612 = vpack.c.b16 %v1584, %v1583
        %v1613 = vpack.c.b16 %v1586, %v1585
        %v1614 = vpack.c.b16 %v1588, %v1587
        %v1615 = vpack.c.b16 %v1590, %v1589
        %v1616 = vpack.c.b16 %v1592, %v1591
        %v1617 = vpack.c.b16 %v1594, %v1593
        %v1618 = vpack.c.b16 %v1596, %v1595
        %v1619 = vpack.c.b16 %v1598, %v1597
        %v1620 = vpack.c.b16 %v1600, %v1599
        %v1621 = vpack.c.b16 %v1602, %v1601
        %v1622 = vpack.c.b16 %v1604, %v1603
        %v1623 = vpack.c.b16 %v1606, %v1605
        %v1624 = vpack.c.b16 %v1608, %v1607
        %1625 = vrot.lane.b32.xlu0 %v1609, 96
        %v1626 = vpop.permute.xlu0 %1625
        %1627 = vrot.lane.b32.xlu0 %v1610, 96
        %v1628 = vpop.permute.xlu0 %1627
        %1629 = vrot.lane.b32.xlu0 %v1611, 96
        %v1630 = vpop.permute.xlu0 %1629
        %1631 = vrot.lane.b32.xlu0 %v1612, 96
        %v1632 = vpop.permute.xlu0 %1631
        %1633 = vrot.lane.b32.xlu0 %v1613, 96
        %v1634 = vpop.permute.xlu0 %1633
        %1635 = vrot.lane.b32.xlu0 %v1614, 96
        %v1636 = vpop.permute.xlu0 %1635
        %1637 = vrot.lane.b32.xlu0 %v1615, 96
        %v1638 = vpop.permute.xlu0 %1637
        %1639 = vrot.lane.b32.xlu0 %v1616, 96
        %v1640 = vpop.permute.xlu0 %1639
        %1641 = vrot.lane.b32.xlu0 %v1617, 96
        %v1642 = vpop.permute.xlu0 %1641
        %1643 = vrot.lane.b32.xlu0 %v1618, 96
        %v1644 = vpop.permute.xlu0 %1643
        %1645 = vrot.lane.b32.xlu0 %v1619, 96
        %v1646 = vpop.permute.xlu0 %1645
        %1647 = vrot.lane.b32.xlu0 %v1620, 96
        %v1648 = vpop.permute.xlu0 %1647
        %1649 = vrot.lane.b32.xlu0 %v1621, 96
        %v1650 = vpop.permute.xlu0 %1649
        %1651 = vrot.lane.b32.xlu0 %v1622, 96
        %v1652 = vpop.permute.xlu0 %1651
        %1653 = vrot.lane.b32.xlu0 %v1623, 96
        %v1654 = vpop.permute.xlu0 %1653
        %1655 = vrot.lane.b32.xlu0 %v1624, 96
        %v1656 = vpop.permute.xlu0 %1655
        %1657 = vrot.lane.b32.xlu0 %v1626, 32
        %v1658 = vpop.permute.xlu0 %1657
        %1659 = vrot.lane.b32.xlu0 %v1628, 32
        %v1660 = vpop.permute.xlu0 %1659
        %1661 = vrot.lane.b32.xlu0 %v1630, 32
        %v1662 = vpop.permute.xlu0 %1661
        %1663 = vrot.lane.b32.xlu0 %v1632, 32
        %v1664 = vpop.permute.xlu0 %1663
        %1665 = vrot.lane.b32.xlu0 %v1634, 32
        %v1666 = vpop.permute.xlu0 %1665
        %1667 = vrot.lane.b32.xlu0 %v1636, 32
        %v1668 = vpop.permute.xlu0 %1667
        %1669 = vrot.lane.b32.xlu0 %v1638, 32
        %v1670 = vpop.permute.xlu0 %1669
        %1671 = vrot.lane.b32.xlu0 %v1640, 32
        %v1672 = vpop.permute.xlu0 %1671
        %1673 = vrot.lane.b32.xlu0 %v1642, 32
        %v1674 = vpop.permute.xlu0 %1673
        %1675 = vrot.lane.b32.xlu0 %v1644, 32
        %v1676 = vpop.permute.xlu0 %1675
        %1677 = vrot.lane.b32.xlu0 %v1646, 32
        %v1678 = vpop.permute.xlu0 %1677
        %1679 = vrot.lane.b32.xlu0 %v1648, 32
        %v1680 = vpop.permute.xlu0 %1679
        %1681 = vrot.lane.b32.xlu0 %v1650, 32
        %v1682 = vpop.permute.xlu0 %1681
        %1683 = vrot.lane.b32.xlu0 %v1652, 32
        %v1684 = vpop.permute.xlu0 %1683
        %1685 = vrot.lane.b32.xlu0 %v1654, 32
        %v1686 = vpop.permute.xlu0 %1685
        %1687 = vrot.lane.b32.xlu0 %v1656, 32
        %v1688 = vpop.permute.xlu0 %1687
        %1689 = vrot.lane.b32.xlu0 %v1628, 64
        %v1690 = vpop.permute.xlu0 %1689
        %1691 = vrot.lane.b32.xlu0 %v1630, 64
        %v1692 = vpop.permute.xlu0 %1691
        %1693 = vrot.lane.b32.xlu0 %v1632, 64
        %v1694 = vpop.permute.xlu0 %1693
        %1695 = vrot.lane.b32.xlu0 %v1634, 64
        %v1696 = vpop.permute.xlu0 %1695
        %1697 = vrot.lane.b32.xlu0 %v1636, 64
        %v1698 = vpop.permute.xlu0 %1697
        %1699 = vrot.lane.b32.xlu0 %v1638, 64
        %v1700 = vpop.permute.xlu0 %1699
        %1701 = vrot.lane.b32.xlu0 %v1640, 64
        %v1702 = vpop.permute.xlu0 %1701
        %1703 = vrot.lane.b32.xlu0 %v1642, 64
        %v1704 = vpop.permute.xlu0 %1703
        %1705 = vrot.lane.b32.xlu0 %v1644, 64
        %v1706 = vpop.permute.xlu0 %1705
        %1707 = vrot.lane.b32.xlu0 %v1646, 64
        %v1708 = vpop.permute.xlu0 %1707
        %1709 = vrot.lane.b32.xlu0 %v1648, 64
        %v1710 = vpop.permute.xlu0 %1709
        %1711 = vrot.lane.b32.xlu0 %v1650, 64
        %v1712 = vpop.permute.xlu0 %1711
        %1713 = vrot.lane.b32.xlu0 %v1652, 64
        %v1714 = vpop.permute.xlu0 %1713
        %1715 = vrot.lane.b32.xlu0 %v1654, 64
        %v1716 = vpop.permute.xlu0 %1715
        %1717 = vrot.lane.b32.xlu0 %v1656, 64
        %v1718 = vpop.permute.xlu0 %1717
        %v1720 = vsel %vm545, 0, %v1658
        %v1723 = vsel %vm545, %v1626, %v1660
        %v1726 = vsel %vm545, %v1628, %v1662
        %v1729 = vsel %vm545, %v1630, %v1664
        %v1732 = vsel %vm545, %v1632, %v1666
        %v1735 = vsel %vm545, %v1634, %v1668
        %v1738 = vsel %vm545, %v1636, %v1670
        %v1741 = vsel %vm545, %v1638, %v1672
        %v1744 = vsel %vm545, %v1640, %v1674
        %v1747 = vsel %vm545, %v1642, %v1676
        %v1750 = vsel %vm545, %v1644, %v1678
        %v1753 = vsel %vm545, %v1646, %v1680
        %v1756 = vsel %vm545, %v1648, %v1682
        %v1759 = vsel %vm545, %v1650, %v1684
        %v1762 = vsel %vm545, %v1652, %v1686
        %v1765 = vsel %vm545, %v1654, %v1688
        %v1767 = vsel %vm594, %v1720, %v1690
        %v1769 = vsel %vm594, %v1723, %v1692
        %v1771 = vsel %vm594, %v1726, %v1694
        %v1773 = vsel %vm594, %v1729, %v1696
        %v1775 = vsel %vm594, %v1732, %v1698
        %v1777 = vsel %vm594, %v1735, %v1700
        %v1779 = vsel %vm594, %v1738, %v1702
        %v1781 = vsel %vm594, %v1741, %v1704
        %v1783 = vsel %vm594, %v1744, %v1706
        %v1785 = vsel %vm594, %v1747, %v1708
        %v1787 = vsel %vm594, %v1750, %v1710
        %v1789 = vsel %vm594, %v1753, %v1712
        %v1791 = vsel %vm594, %v1756, %v1714
        %v1793 = vsel %vm594, %v1759, %v1716
        %v1795 = vsel %vm594, %v1762, %v1718
        %v1796 = vsel %vm594, %v1765, %v544
        %v1797 = vld [vmem:[%s3] sm:$0xf]
        %v1798 = vld [vmem:[%s3 + $0x4] sm:$0xf]
        %v1799 = vld [vmem:[%s3 + $0x8] sm:$0xf]
        %v1800 = vld [vmem:[%s3 + $0xc] sm:$0xf]
        %v1801 = vld [vmem:[%s3 + $0x10] sm:$0xf]
        %v1802 = vld [vmem:[%s3 + $0x14] sm:$0xf]
        %v1803 = vld [vmem:[%s3 + $0x18] sm:$0xf]
        %v1804 = vld [vmem:[%s3 + $0x1c] sm:$0xf]
        %v1805 = vld [vmem:[%s3 + $0x20] sm:$0xf]
        %v1806 = vld [vmem:[%s3 + $0x24] sm:$0xf]
        %v1807 = vld [vmem:[%s3 + $0x28] sm:$0xf]
        %v1808 = vld [vmem:[%s3 + $0x2c] sm:$0xf]
        %v1821 = vunpack.c.l.b16 %v1797
        %v1822 = vunpack.c.l.b16 %v1798
        %v1823 = vunpack.c.l.b16 %v1799
        %v1824 = vunpack.c.l.b16 %v1800
        %v1825 = vunpack.c.l.b16 %v1801
        %v1826 = vunpack.c.l.b16 %v1802
        %v1827 = vunpack.c.l.b16 %v1803
        %v1828 = vunpack.c.l.b16 %v1804
        %v1829 = vunpack.c.l.b16 %v1805
        %v1830 = vunpack.c.l.b16 %v1806
        %v1831 = vunpack.c.l.b16 %v1807
        %v1832 = vunpack.c.l.b16 %v1808
        %v1833 = vpack.c.b16 %v1822, %v1821
        %v1834 = vpack.c.b16 %v1824, %v1823
        %v1835 = vpack.c.b16 %v1826, %v1825
        %v1836 = vpack.c.b16 %v1828, %v1827
        %v1837 = vpack.c.b16 %v1830, %v1829
        %v1838 = vpack.c.b16 %v1832, %v1831
        %v1845 = vsel %vm675, %v1767, 0
        %v1847 = vsel %vm675, %v1769, 0
        %v1849 = vsel %vm675, %v1771, 0
        %v1851 = vsel %vm675, %v1773, 0
        %v1853 = vsel %vm675, %v1775, 0
        %v1855 = vsel %vm675, %v1777, 0
        %v1857 = vsel %vm675, %v1779, 0
        %v1859 = vsel %vm675, %v1781, 0
        %v1861 = vsel %vm675, %v1783, 0
        %v1863 = vsel %vm675, %v1785, 0
        %v1865 = vsel %vm675, %v1787, 0
        %v1867 = vsel %vm675, %v1789, 0
        %v1869 = vsel %vm675, %v1791, 0
        %v1871 = vsel %vm675, %v1793, 0
        %v1873 = vsel %vm675, %v1795, 0
        %v1875 = vsel %vm675, %v1796, 0
        %1877 = vmatpush.bf16.msra.mxu0 0
        %1878 = vmatpush.bf16.msra.mxu0 0
        %1879 = vmatpush.bf16.msra.mxu0 %v1838
        %1880 = vmatpush.bf16.msra.mxu0 %v1837
        %1881 = vmatpush.bf16.msra.mxu0 %v1836
        %1882 = vmatpush.bf16.msra.mxu0 %v1835
        %1883 = vmatpush.bf16.msra.mxu0 %v1834
        %1884 = vmatpush.bf16.msra.mxu0 %v1833
        %1885 = vmatmul.bf16.gmra.mxu0 %v1845
        %v1886 = vpop.f32.mrf.mxu0
        %v1887 = vadd.f32 0.0, %v1886
        %v1888 = vpop.f32.mrf.mxu0
        %v1889 = vadd.f32 0.0, %v1888
        %1890 = vmatmul.bf16.gmra.mxu0 %v1847
        %v1891 = vpop.f32.mrf.mxu0
        %v1892 = vadd.f32 0.0, %v1891
        %v1893 = vpop.f32.mrf.mxu0
        %v1894 = vadd.f32 0.0, %v1893
        %1895 = vmatmul.bf16.gmra.mxu0 %v1849
        %v1896 = vpop.f32.mrf.mxu0
        %v1897 = vadd.f32 0.0, %v1896
        %v1898 = vpop.f32.mrf.mxu0
        %v1899 = vadd.f32 0.0, %v1898
        %1900 = vmatmul.bf16.gmra.mxu0 %v1851
        %v1901 = vpop.f32.mrf.mxu0
        %v1902 = vadd.f32 0.0, %v1901
        %v1903 = vpop.f32.mrf.mxu0
        %v1904 = vadd.f32 0.0, %v1903
        %1905 = vmatmul.bf16.gmra.mxu0 %v1853
        %v1906 = vpop.f32.mrf.mxu0
        %v1907 = vadd.f32 0.0, %v1906
        %v1908 = vpop.f32.mrf.mxu0
        %v1909 = vadd.f32 0.0, %v1908
        %1910 = vmatmul.bf16.gmra.mxu0 %v1855
        %v1911 = vpop.f32.mrf.mxu0
        %v1912 = vadd.f32 0.0, %v1911
        %v1913 = vpop.f32.mrf.mxu0
        %v1914 = vadd.f32 0.0, %v1913
        %1915 = vmatmul.bf16.gmra.mxu0 %v1857
        %v1916 = vpop.f32.mrf.mxu0
        %v1917 = vadd.f32 0.0, %v1916
        %v1918 = vpop.f32.mrf.mxu0
        %v1919 = vadd.f32 0.0, %v1918
        %1920 = vmatmul.bf16.gmra.mxu0 %v1859
        %v1921 = vpop.f32.mrf.mxu0
        %v1922 = vadd.f32 0.0, %v1921
        %v1923 = vpop.f32.mrf.mxu0
        %v1924 = vadd.f32 0.0, %v1923
        %1925 = vmatmul.bf16.gmra.mxu0 %v1861
        %v1926 = vpop.f32.mrf.mxu0
        %v1927 = vadd.f32 0.0, %v1926
        %v1928 = vpop.f32.mrf.mxu0
        %v1929 = vadd.f32 0.0, %v1928
        %1930 = vmatmul.bf16.gmra.mxu0 %v1863
        %v1931 = vpop.f32.mrf.mxu0
        %v1932 = vadd.f32 0.0, %v1931
        %v1933 = vpop.f32.mrf.mxu0
        %v1934 = vadd.f32 0.0, %v1933
        %1935 = vmatmul.bf16.gmra.mxu0 %v1865
        %v1936 = vpop.f32.mrf.mxu0
        %v1937 = vadd.f32 0.0, %v1936
        %v1938 = vpop.f32.mrf.mxu0
        %v1939 = vadd.f32 0.0, %v1938
        %1940 = vmatmul.bf16.gmra.mxu0 %v1867
        %v1941 = vpop.f32.mrf.mxu0
        %v1942 = vadd.f32 0.0, %v1941
        %v1943 = vpop.f32.mrf.mxu0
        %v1944 = vadd.f32 0.0, %v1943
        %1945 = vmatmul.bf16.gmra.mxu0 %v1869
        %v1946 = vpop.f32.mrf.mxu0
        %v1947 = vadd.f32 0.0, %v1946
        %v1948 = vpop.f32.mrf.mxu0
        %v1949 = vadd.f32 0.0, %v1948
        %1950 = vmatmul.bf16.gmra.mxu0 %v1871
        %v1951 = vpop.f32.mrf.mxu0
        %v1952 = vadd.f32 0.0, %v1951
        %v1953 = vpop.f32.mrf.mxu0
        %v1954 = vadd.f32 0.0, %v1953
        %1955 = vmatmul.bf16.gmra.mxu0 %v1873
        %v1956 = vpop.f32.mrf.mxu0
        %v1957 = vadd.f32 0.0, %v1956
        %v1958 = vpop.f32.mrf.mxu0
        %v1959 = vadd.f32 0.0, %v1958
        %1960 = vmatmul.bf16.gmra.mxu0 %v1875
        %v1961 = vpop.f32.mrf.mxu0
        %v1962 = vadd.f32 0.0, %v1961
        %v1963 = vpop.f32.mrf.mxu0
        %v1964 = vadd.f32 0.0, %v1963
        %1965 = vdwg.mxu0
        %v1966 = vrot.slane %v1887, 7
        %v1967 = vrot.slane %v1892, 7
        %v1968 = vrot.slane %v1897, 7
        %v1969 = vrot.slane %v1902, 7
        %v1970 = vrot.slane %v1907, 7
        %v1971 = vrot.slane %v1912, 7
        %v1972 = vrot.slane %v1917, 7
        %v1973 = vrot.slane %v1922, 7
        %v1974 = vrot.slane %v1927, 7
        %v1975 = vrot.slane %v1932, 7
        %v1976 = vrot.slane %v1937, 7
        %v1977 = vrot.slane %v1942, 7
        %v1978 = vrot.slane %v1947, 7
        %v1979 = vrot.slane %v1952, 7
        %v1980 = vrot.slane %v1957, 7
        %v1981 = vrot.slane %v1962, 7
        %v1982 = vrot.slane %v1889, 7
        %v1983 = vrot.slane %v1894, 7
        %v1984 = vrot.slane %v1899, 7
        %v1985 = vrot.slane %v1904, 7
        %v1986 = vrot.slane %v1909, 7
        %v1987 = vrot.slane %v1914, 7
        %v1988 = vrot.slane %v1919, 7
        %v1989 = vrot.slane %v1924, 7
        %v1990 = vrot.slane %v1929, 7
        %v1991 = vrot.slane %v1934, 7
        %v1992 = vrot.slane %v1939, 7
        %v1993 = vrot.slane %v1944, 7
        %v1994 = vrot.slane %v1949, 7
        %v1995 = vrot.slane %v1954, 7
        %v1996 = vrot.slane %v1959, 7
        %v1997 = vrot.slane %v1964, 7
        %v1998 = vsel %vm831, %v1966, %v1982
        %v1999 = vsel %vm831, %v1967, %v1983
        %v2000 = vsel %vm831, %v1968, %v1984
        %v2001 = vsel %vm831, %v1969, %v1985
        %v2002 = vsel %vm831, %v1970, %v1986
        %v2003 = vsel %vm831, %v1971, %v1987
        %v2004 = vsel %vm831, %v1972, %v1988
        %v2005 = vsel %vm831, %v1973, %v1989
        %v2006 = vsel %vm831, %v1974, %v1990
        %v2007 = vsel %vm831, %v1975, %v1991
        %v2008 = vsel %vm831, %v1976, %v1992
        %v2009 = vsel %vm831, %v1977, %v1993
        %v2010 = vsel %vm831, %v1978, %v1994
        %v2011 = vsel %vm831, %v1979, %v1995
        %v2012 = vsel %vm831, %v1980, %v1996
        %v2013 = vsel %vm831, %v1981, %v1997
        %v2014 = vsel %vm831, %v1982, %v1966
        %v2015 = vsel %vm831, %v1983, %v1967
        %v2016 = vsel %vm831, %v1984, %v1968
        %v2017 = vsel %vm831, %v1985, %v1969
        %v2018 = vsel %vm831, %v1986, %v1970
        %v2019 = vsel %vm831, %v1987, %v1971
        %v2020 = vsel %vm831, %v1988, %v1972
        %v2021 = vsel %vm831, %v1989, %v1973
        %v2022 = vsel %vm831, %v1990, %v1974
        %v2023 = vsel %vm831, %v1991, %v1975
        %v2024 = vsel %vm831, %v1992, %v1976
        %v2025 = vsel %vm831, %v1993, %v1977
        %v2026 = vsel %vm831, %v1994, %v1978
        %v2027 = vsel %vm831, %v1995, %v1979
        %v2028 = vsel %vm831, %v1996, %v1980
        %v2029 = vsel %vm831, %v1997, %v1981
        %v2030 = vsel %vm797, %v2014, 0.0
        %v2031 = vsel %vm798, %v1998, 0.0
        %v2032 = vsel %vm797, %v2015, 0.0
        %v2033 = vsel %vm798, %v1999, 0.0
        %v2034 = vsel %vm797, %v2016, 0.0
        %v2035 = vsel %vm798, %v2000, 0.0
        %v2036 = vsel %vm797, %v2017, 0.0
        %v2037 = vsel %vm798, %v2001, 0.0
        %v2038 = vsel %vm797, %v2018, 0.0
        %v2039 = vsel %vm798, %v2002, 0.0
        %v2040 = vsel %vm797, %v2019, 0.0
        %v2041 = vsel %vm798, %v2003, 0.0
        %v2042 = vsel %vm797, %v2020, 0.0
        %v2043 = vsel %vm798, %v2004, 0.0
        %v2044 = vsel %vm797, %v2021, 0.0
        %v2045 = vsel %vm798, %v2005, 0.0
        %v2046 = vsel %vm797, %v2022, 0.0
        %v2047 = vsel %vm798, %v2006, 0.0
        %v2048 = vsel %vm797, %v2023, 0.0
        %v2049 = vsel %vm798, %v2007, 0.0
        %v2050 = vsel %vm797, %v2024, 0.0
        %v2051 = vsel %vm798, %v2008, 0.0
        %v2052 = vsel %vm797, %v2025, 0.0
        %v2053 = vsel %vm798, %v2009, 0.0
        %v2054 = vsel %vm797, %v2026, 0.0
        %v2055 = vsel %vm798, %v2010, 0.0
        %v2056 = vsel %vm797, %v2027, 0.0
        %v2057 = vsel %vm798, %v2011, 0.0
        %v2058 = vsel %vm797, %v2028, 0.0
        %v2059 = vsel %vm798, %v2012, 0.0
        %v2060 = vsel %vm797, %v2029, 0.0
        %v2061 = vsel %vm798, %v2013, 0.0
        %2094 = vrot.lane.b32.xlu0 %v1887, 64
        %v2095 = vpop.permute.xlu0 %2094
        %2096 = vrot.lane.b32.xlu0 %v1889, 64
        %v2097 = vpop.permute.xlu0 %2096
        %2098 = vrot.lane.b32.xlu0 %v1892, 64
        %v2099 = vpop.permute.xlu0 %2098
        %2100 = vrot.lane.b32.xlu0 %v1894, 64
        %v2101 = vpop.permute.xlu0 %2100
        %2102 = vrot.lane.b32.xlu0 %v1897, 64
        %v2103 = vpop.permute.xlu0 %2102
        %2104 = vrot.lane.b32.xlu0 %v1899, 64
        %v2105 = vpop.permute.xlu0 %2104
        %2106 = vrot.lane.b32.xlu0 %v1902, 64
        %v2107 = vpop.permute.xlu0 %2106
        %2108 = vrot.lane.b32.xlu0 %v1904, 64
        %v2109 = vpop.permute.xlu0 %2108
        %2110 = vrot.lane.b32.xlu0 %v1907, 64
        %v2111 = vpop.permute.xlu0 %2110
        %2112 = vrot.lane.b32.xlu0 %v1909, 64
        %v2113 = vpop.permute.xlu0 %2112
        %2114 = vrot.lane.b32.xlu0 %v1912, 64
        %v2115 = vpop.permute.xlu0 %2114
        %2116 = vrot.lane.b32.xlu0 %v1914, 64
        %v2117 = vpop.permute.xlu0 %2116
        %2118 = vrot.lane.b32.xlu0 %v1917, 64
        %v2119 = vpop.permute.xlu0 %2118
        %2120 = vrot.lane.b32.xlu0 %v1919, 64
        %v2121 = vpop.permute.xlu0 %2120
        %2122 = vrot.lane.b32.xlu0 %v1922, 64
        %v2123 = vpop.permute.xlu0 %2122
        %2124 = vrot.lane.b32.xlu0 %v1924, 64
        %v2125 = vpop.permute.xlu0 %2124
        %2126 = vrot.lane.b32.xlu0 %v1927, 64
        %v2127 = vpop.permute.xlu0 %2126
        %2128 = vrot.lane.b32.xlu0 %v1929, 64
        %v2129 = vpop.permute.xlu0 %2128
        %2130 = vrot.lane.b32.xlu0 %v1932, 64
        %v2131 = vpop.permute.xlu0 %2130
        %2132 = vrot.lane.b32.xlu0 %v1934, 64
        %v2133 = vpop.permute.xlu0 %2132
        %2134 = vrot.lane.b32.xlu0 %v1937, 64
        %v2135 = vpop.permute.xlu0 %2134
        %2136 = vrot.lane.b32.xlu0 %v1939, 64
        %v2137 = vpop.permute.xlu0 %2136
        %2138 = vrot.lane.b32.xlu0 %v1942, 64
        %v2139 = vpop.permute.xlu0 %2138
        %2140 = vrot.lane.b32.xlu0 %v1944, 64
        %v2141 = vpop.permute.xlu0 %2140
        %2142 = vrot.lane.b32.xlu0 %v1947, 64
        %v2143 = vpop.permute.xlu0 %2142
        %2144 = vrot.lane.b32.xlu0 %v1949, 64
        %v2145 = vpop.permute.xlu0 %2144
        %2146 = vrot.lane.b32.xlu0 %v1952, 64
        %v2147 = vpop.permute.xlu0 %2146
        %2148 = vrot.lane.b32.xlu0 %v1954, 64
        %v2149 = vpop.permute.xlu0 %2148
        %2150 = vrot.lane.b32.xlu0 %v1957, 64
        %v2151 = vpop.permute.xlu0 %2150
        %2152 = vrot.lane.b32.xlu0 %v1959, 64
        %v2153 = vpop.permute.xlu0 %2152
        %2154 = vrot.lane.b32.xlu0 %v1962, 64
        %v2155 = vpop.permute.xlu0 %2154
        %2156 = vrot.lane.b32.xlu0 %v1964, 64
        %v2157 = vpop.permute.xlu0 %2156
        %v2190 = vrot.slane %v2095, 1
        %v2191 = vrot.slane %v2099, 1
        %v2192 = vrot.slane %v2103, 1
        %v2193 = vrot.slane %v2107, 1
        %v2194 = vrot.slane %v2111, 1
        %v2195 = vrot.slane %v2115, 1
        %v2196 = vrot.slane %v2119, 1
        %v2197 = vrot.slane %v2123, 1
        %v2198 = vrot.slane %v2127, 1
        %v2199 = vrot.slane %v2131, 1
        %v2200 = vrot.slane %v2135, 1
        %v2201 = vrot.slane %v2139, 1
        %v2202 = vrot.slane %v2143, 1
        %v2203 = vrot.slane %v2147, 1
        %v2204 = vrot.slane %v2151, 1
        %v2205 = vrot.slane %v2155, 1
        %v2206 = vrot.slane %v2097, 1
        %v2207 = vrot.slane %v2101, 1
        %v2208 = vrot.slane %v2105, 1
        %v2209 = vrot.slane %v2109, 1
        %v2210 = vrot.slane %v2113, 1
        %v2211 = vrot.slane %v2117, 1
        %v2212 = vrot.slane %v2121, 1
        %v2213 = vrot.slane %v2125, 1
        %v2214 = vrot.slane %v2129, 1
        %v2215 = vrot.slane %v2133, 1
        %v2216 = vrot.slane %v2137, 1
        %v2217 = vrot.slane %v2141, 1
        %v2218 = vrot.slane %v2145, 1
        %v2219 = vrot.slane %v2149, 1
        %v2220 = vrot.slane %v2153, 1
        %v2221 = vrot.slane %v2157, 1
        %v2222 = vsel %vm1058, %v2190, %v2206
        %v2223 = vsel %vm1058, %v2191, %v2207
        %v2224 = vsel %vm1058, %v2192, %v2208
        %v2225 = vsel %vm1058, %v2193, %v2209
        %v2226 = vsel %vm1058, %v2194, %v2210
        %v2227 = vsel %vm1058, %v2195, %v2211
        %v2228 = vsel %vm1058, %v2196, %v2212
        %v2229 = vsel %vm1058, %v2197, %v2213
        %v2230 = vsel %vm1058, %v2198, %v2214
        %v2231 = vsel %vm1058, %v2199, %v2215
        %v2232 = vsel %vm1058, %v2200, %v2216
        %v2233 = vsel %vm1058, %v2201, %v2217
        %v2234 = vsel %vm1058, %v2202, %v2218
        %v2235 = vsel %vm1058, %v2203, %v2219
        %v2236 = vsel %vm1058, %v2204, %v2220
        %v2237 = vsel %vm1058, %v2205, %v2221
        %v2238 = vsel %vm1058, %v2206, %v2190
        %v2239 = vsel %vm1058, %v2207, %v2191
        %v2240 = vsel %vm1058, %v2208, %v2192
        %v2241 = vsel %vm1058, %v2209, %v2193
        %v2242 = vsel %vm1058, %v2210, %v2194
        %v2243 = vsel %vm1058, %v2211, %v2195
        %v2244 = vsel %vm1058, %v2212, %v2196
        %v2245 = vsel %vm1058, %v2213, %v2197
        %v2246 = vsel %vm1058, %v2214, %v2198
        %v2247 = vsel %vm1058, %v2215, %v2199
        %v2248 = vsel %vm1058, %v2216, %v2200
        %v2249 = vsel %vm1058, %v2217, %v2201
        %v2250 = vsel %vm1058, %v2218, %v2202
        %v2251 = vsel %vm1058, %v2219, %v2203
        %v2252 = vsel %vm1058, %v2220, %v2204
        %v2253 = vsel %vm1058, %v2221, %v2205
        %v2254 = vsel %vm896, %v2222, 0.0
        %v2255 = vsel %vm897, %v2238, 0.0
        %v2256 = vsel %vm896, %v2223, 0.0
        %v2257 = vsel %vm897, %v2239, 0.0
        %v2258 = vsel %vm896, %v2224, 0.0
        %v2259 = vsel %vm897, %v2240, 0.0
        %v2260 = vsel %vm896, %v2225, 0.0
        %v2261 = vsel %vm897, %v2241, 0.0
        %v2262 = vsel %vm896, %v2226, 0.0
        %v2263 = vsel %vm897, %v2242, 0.0
        %v2264 = vsel %vm896, %v2227, 0.0
        %v2265 = vsel %vm897, %v2243, 0.0
        %v2266 = vsel %vm896, %v2228, 0.0
        %v2267 = vsel %vm897, %v2244, 0.0
        %v2268 = vsel %vm896, %v2229, 0.0
        %v2269 = vsel %vm897, %v2245, 0.0
        %v2270 = vsel %vm896, %v2230, 0.0
        %v2271 = vsel %vm897, %v2246, 0.0
        %v2272 = vsel %vm896, %v2231, 0.0
        %v2273 = vsel %vm897, %v2247, 0.0
        %v2274 = vsel %vm896, %v2232, 0.0
        %v2275 = vsel %vm897, %v2248, 0.0
        %v2276 = vsel %vm896, %v2233, 0.0
        %v2277 = vsel %vm897, %v2249, 0.0
        %v2278 = vsel %vm896, %v2234, 0.0
        %v2279 = vsel %vm897, %v2250, 0.0
        %v2280 = vsel %vm896, %v2235, 0.0
        %v2281 = vsel %vm897, %v2251, 0.0
        %v2282 = vsel %vm896, %v2236, 0.0
        %v2283 = vsel %vm897, %v2252, 0.0
        %v2284 = vsel %vm896, %v2237, 0.0
        %v2285 = vsel %vm897, %v2253, 0.0
        %2318 = vrot.lane.b32.xlu0 %v2030, 32
        %v2319 = vpop.permute.xlu0 %2318
        %2320 = vrot.lane.b32.xlu0 %v2031, 32
        %v2321 = vpop.permute.xlu0 %2320
        %2322 = vrot.lane.b32.xlu0 %v2032, 32
        %v2323 = vpop.permute.xlu0 %2322
        %2324 = vrot.lane.b32.xlu0 %v2033, 32
        %v2325 = vpop.permute.xlu0 %2324
        %2326 = vrot.lane.b32.xlu0 %v2034, 32
        %v2327 = vpop.permute.xlu0 %2326
        %2328 = vrot.lane.b32.xlu0 %v2035, 32
        %v2329 = vpop.permute.xlu0 %2328
        %2330 = vrot.lane.b32.xlu0 %v2036, 32
        %v2331 = vpop.permute.xlu0 %2330
        %2332 = vrot.lane.b32.xlu0 %v2037, 32
        %v2333 = vpop.permute.xlu0 %2332
        %2334 = vrot.lane.b32.xlu0 %v2038, 32
        %v2335 = vpop.permute.xlu0 %2334
        %2336 = vrot.lane.b32.xlu0 %v2039, 32
        %v2337 = vpop.permute.xlu0 %2336
        %2338 = vrot.lane.b32.xlu0 %v2040, 32
        %v2339 = vpop.permute.xlu0 %2338
        %2340 = vrot.lane.b32.xlu0 %v2041, 32
        %v2341 = vpop.permute.xlu0 %2340
        %2342 = vrot.lane.b32.xlu0 %v2042, 32
        %v2343 = vpop.permute.xlu0 %2342
        %2344 = vrot.lane.b32.xlu0 %v2043, 32
        %v2345 = vpop.permute.xlu0 %2344
        %2346 = vrot.lane.b32.xlu0 %v2044, 32
        %v2347 = vpop.permute.xlu0 %2346
        %2348 = vrot.lane.b32.xlu0 %v2045, 32
        %v2349 = vpop.permute.xlu0 %2348
        %2350 = vrot.lane.b32.xlu0 %v2046, 32
        %v2351 = vpop.permute.xlu0 %2350
        %2352 = vrot.lane.b32.xlu0 %v2047, 32
        %v2353 = vpop.permute.xlu0 %2352
        %2354 = vrot.lane.b32.xlu0 %v2048, 32
        %v2355 = vpop.permute.xlu0 %2354
        %2356 = vrot.lane.b32.xlu0 %v2049, 32
        %v2357 = vpop.permute.xlu0 %2356
        %2358 = vrot.lane.b32.xlu0 %v2050, 32
        %v2359 = vpop.permute.xlu0 %2358
        %2360 = vrot.lane.b32.xlu0 %v2051, 32
        %v2361 = vpop.permute.xlu0 %2360
        %2362 = vrot.lane.b32.xlu0 %v2052, 32
        %v2363 = vpop.permute.xlu0 %2362
        %2364 = vrot.lane.b32.xlu0 %v2053, 32
        %v2365 = vpop.permute.xlu0 %2364
        %2366 = vrot.lane.b32.xlu0 %v2054, 32
        %v2367 = vpop.permute.xlu0 %2366
        %2368 = vrot.lane.b32.xlu0 %v2055, 32
        %v2369 = vpop.permute.xlu0 %2368
        %2370 = vrot.lane.b32.xlu0 %v2056, 32
        %v2371 = vpop.permute.xlu0 %2370
        %2372 = vrot.lane.b32.xlu0 %v2057, 32
        %v2373 = vpop.permute.xlu0 %2372
        %2374 = vrot.lane.b32.xlu0 %v2058, 32
        %v2375 = vpop.permute.xlu0 %2374
        %2376 = vrot.lane.b32.xlu0 %v2059, 32
        %v2377 = vpop.permute.xlu0 %2376
        %2378 = vrot.lane.b32.xlu0 %v2060, 32
        %v2379 = vpop.permute.xlu0 %2378
        %2380 = vrot.lane.b32.xlu0 %v2061, 32
        %v2381 = vpop.permute.xlu0 %2380
        %v2414 = vadd.f32 %v1887, %v2319
        %v2415 = vadd.f32 %v1889, %v2321
        %v2416 = vadd.f32 %v1892, %v2323
        %v2417 = vadd.f32 %v1894, %v2325
        %v2418 = vadd.f32 %v1897, %v2327
        %v2419 = vadd.f32 %v1899, %v2329
        %v2420 = vadd.f32 %v1902, %v2331
        %v2421 = vadd.f32 %v1904, %v2333
        %v2422 = vadd.f32 %v1907, %v2335
        %v2423 = vadd.f32 %v1909, %v2337
        %v2424 = vadd.f32 %v1912, %v2339
        %v2425 = vadd.f32 %v1914, %v2341
        %v2426 = vadd.f32 %v1917, %v2343
        %v2427 = vadd.f32 %v1919, %v2345
        %v2428 = vadd.f32 %v1922, %v2347
        %v2429 = vadd.f32 %v1924, %v2349
        %v2430 = vadd.f32 %v1927, %v2351
        %v2431 = vadd.f32 %v1929, %v2353
        %v2432 = vadd.f32 %v1932, %v2355
        %v2433 = vadd.f32 %v1934, %v2357
        %v2434 = vadd.f32 %v1937, %v2359
        %v2435 = vadd.f32 %v1939, %v2361
        %v2436 = vadd.f32 %v1942, %v2363
        %v2437 = vadd.f32 %v1944, %v2365
        %v2438 = vadd.f32 %v1947, %v2367
        %v2439 = vadd.f32 %v1949, %v2369
        %v2440 = vadd.f32 %v1952, %v2371
        %v2441 = vadd.f32 %v1954, %v2373
        %v2442 = vadd.f32 %v1957, %v2375
        %v2443 = vadd.f32 %v1959, %v2377
        %v2444 = vadd.f32 %v1962, %v2379
        %v2445 = vadd.f32 %v1964, %v2381
        %2478 = vrot.lane.b32.xlu0 %v2254, 32
        %v2479 = vpop.permute.xlu0 %2478
        %2480 = vrot.lane.b32.xlu0 %v2255, 32
        %v2481 = vpop.permute.xlu0 %2480
        %2482 = vrot.lane.b32.xlu0 %v2256, 32
        %v2483 = vpop.permute.xlu0 %2482
        %2484 = vrot.lane.b32.xlu0 %v2257, 32
        %v2485 = vpop.permute.xlu0 %2484
        %2486 = vrot.lane.b32.xlu0 %v2258, 32
        %v2487 = vpop.permute.xlu0 %2486
        %2488 = vrot.lane.b32.xlu0 %v2259, 32
        %v2489 = vpop.permute.xlu0 %2488
        %2490 = vrot.lane.b32.xlu0 %v2260, 32
        %v2491 = vpop.permute.xlu0 %2490
        %2492 = vrot.lane.b32.xlu0 %v2261, 32
        %v2493 = vpop.permute.xlu0 %2492
        %2494 = vrot.lane.b32.xlu0 %v2262, 32
        %v2495 = vpop.permute.xlu0 %2494
        %2496 = vrot.lane.b32.xlu0 %v2263, 32
        %v2497 = vpop.permute.xlu0 %2496
        %2498 = vrot.lane.b32.xlu0 %v2264, 32
        %v2499 = vpop.permute.xlu0 %2498
        %2500 = vrot.lane.b32.xlu0 %v2265, 32
        %v2501 = vpop.permute.xlu0 %2500
        %2502 = vrot.lane.b32.xlu0 %v2266, 32
        %v2503 = vpop.permute.xlu0 %2502
        %2504 = vrot.lane.b32.xlu0 %v2267, 32
        %v2505 = vpop.permute.xlu0 %2504
        %2506 = vrot.lane.b32.xlu0 %v2268, 32
        %v2507 = vpop.permute.xlu0 %2506
        %2508 = vrot.lane.b32.xlu0 %v2269, 32
        %v2509 = vpop.permute.xlu0 %2508
        %2510 = vrot.lane.b32.xlu0 %v2270, 32
        %v2511 = vpop.permute.xlu0 %2510
        %2512 = vrot.lane.b32.xlu0 %v2271, 32
        %v2513 = vpop.permute.xlu0 %2512
        %2514 = vrot.lane.b32.xlu0 %v2272, 32
        %v2515 = vpop.permute.xlu0 %2514
        %2516 = vrot.lane.b32.xlu0 %v2273, 32
        %v2517 = vpop.permute.xlu0 %2516
        %2518 = vrot.lane.b32.xlu0 %v2274, 32
        %v2519 = vpop.permute.xlu0 %2518
        %2520 = vrot.lane.b32.xlu0 %v2275, 32
        %v2521 = vpop.permute.xlu0 %2520
        %2522 = vrot.lane.b32.xlu0 %v2276, 32
        %v2523 = vpop.permute.xlu0 %2522
        %2524 = vrot.lane.b32.xlu0 %v2277, 32
        %v2525 = vpop.permute.xlu0 %2524
        %2526 = vrot.lane.b32.xlu0 %v2278, 32
        %v2527 = vpop.permute.xlu0 %2526
        %2528 = vrot.lane.b32.xlu0 %v2279, 32
        %v2529 = vpop.permute.xlu0 %2528
        %2530 = vrot.lane.b32.xlu0 %v2280, 32
        %v2531 = vpop.permute.xlu0 %2530
        %2532 = vrot.lane.b32.xlu0 %v2281, 32
        %v2533 = vpop.permute.xlu0 %2532
        %2534 = vrot.lane.b32.xlu0 %v2282, 32
        %v2535 = vpop.permute.xlu0 %2534
        %2536 = vrot.lane.b32.xlu0 %v2283, 32
        %v2537 = vpop.permute.xlu0 %2536
        %2538 = vrot.lane.b32.xlu0 %v2284, 32
        %v2539 = vpop.permute.xlu0 %2538
        %2540 = vrot.lane.b32.xlu0 %v2285, 32
        %v2541 = vpop.permute.xlu0 %2540
        %v2574 = vadd.f32 %v2414, %v2479
        %v2575 = vadd.f32 %v2415, %v2481
        %v2576 = vadd.f32 %v2416, %v2483
        %v2577 = vadd.f32 %v2417, %v2485
        %v2578 = vadd.f32 %v2418, %v2487
        %v2579 = vadd.f32 %v2419, %v2489
        %v2580 = vadd.f32 %v2420, %v2491
        %v2581 = vadd.f32 %v2421, %v2493
        %v2582 = vadd.f32 %v2422, %v2495
        %v2583 = vadd.f32 %v2423, %v2497
        %v2584 = vadd.f32 %v2424, %v2499
        %v2585 = vadd.f32 %v2425, %v2501
        %v2586 = vadd.f32 %v2426, %v2503
        %v2587 = vadd.f32 %v2427, %v2505
        %v2588 = vadd.f32 %v2428, %v2507
        %v2589 = vadd.f32 %v2429, %v2509
        %v2590 = vadd.f32 %v2430, %v2511
        %v2591 = vadd.f32 %v2431, %v2513
        %v2592 = vadd.f32 %v2432, %v2515
        %v2593 = vadd.f32 %v2433, %v2517
        %v2594 = vadd.f32 %v2434, %v2519
        %v2595 = vadd.f32 %v2435, %v2521
        %v2596 = vadd.f32 %v2436, %v2523
        %v2597 = vadd.f32 %v2437, %v2525
        %v2598 = vadd.f32 %v2438, %v2527
        %v2599 = vadd.f32 %v2439, %v2529
        %v2600 = vadd.f32 %v2440, %v2531
        %v2601 = vadd.f32 %v2441, %v2533
        %v2602 = vadd.f32 %v2442, %v2535
        %v2603 = vadd.f32 %v2443, %v2537
        %v2604 = vadd.f32 %v2444, %v2539
        %v2605 = vadd.f32 %v2445, %v2541
        %v2607 = vperm.slane %v1512, 0
        %2608 = vrot.lane.b32.xlu0 %v2607, 32
        %v2609 = vpop.permute.xlu0 %2608
        %v2611 = vadd.f32 %v2574, %v2609
        %v2612 = vadd.f32 %v2575, %v2609
        %v2613 = vadd.f32 %v2576, %v2609
        %v2614 = vadd.f32 %v2577, %v2609
        %v2615 = vadd.f32 %v2578, %v2609
        %v2616 = vadd.f32 %v2579, %v2609
        %v2617 = vadd.f32 %v2580, %v2609
        %v2618 = vadd.f32 %v2581, %v2609
        %v2619 = vadd.f32 %v2582, %v2609
        %v2620 = vadd.f32 %v2583, %v2609
        %v2621 = vadd.f32 %v2584, %v2609
        %v2622 = vadd.f32 %v2585, %v2609
        %v2623 = vadd.f32 %v2586, %v2609
        %v2624 = vadd.f32 %v2587, %v2609
        %v2625 = vadd.f32 %v2588, %v2609
        %v2626 = vadd.f32 %v2589, %v2609
        %v2627 = vadd.f32 %v2590, %v2609
        %v2628 = vadd.f32 %v2591, %v2609
        %v2629 = vadd.f32 %v2592, %v2609
        %v2630 = vadd.f32 %v2593, %v2609
        %v2631 = vadd.f32 %v2594, %v2609
        %v2632 = vadd.f32 %v2595, %v2609
        %v2633 = vadd.f32 %v2596, %v2609
        %v2634 = vadd.f32 %v2597, %v2609
        %v2635 = vadd.f32 %v2598, %v2609
        %v2636 = vadd.f32 %v2599, %v2609
        %v2637 = vadd.f32 %v2600, %v2609
        %v2638 = vadd.f32 %v2601, %v2609
        %v2639 = vadd.f32 %v2602, %v2609
        %v2640 = vadd.f32 %v2603, %v2609
        %v2641 = vadd.f32 %v2604, %v2609
        %v2642 = vadd.f32 %v2605, %v2609
        %vm2643 = vcmask 523520
        %v2644 = vsel %vm2643, %v2611, 0.0
        %v2645 = vsel %vm2643, %v2612, 0.0
        %v2646 = vadd.f32 %v2644, %v2645
        %v2647 = vsel %vm2643, %v2613, 0.0
        %v2648 = vadd.f32 %v2646, %v2647
        %v2649 = vsel %vm2643, %v2614, 0.0
        %v2650 = vadd.f32 %v2648, %v2649
        %v2651 = vsel %vm2643, %v2615, 0.0
        %v2652 = vadd.f32 %v2650, %v2651
        %v2653 = vsel %vm2643, %v2616, 0.0
        %v2654 = vadd.f32 %v2652, %v2653
        %v2655 = vsel %vm2643, %v2617, 0.0
        %v2656 = vadd.f32 %v2654, %v2655
        %v2657 = vsel %vm2643, %v2618, 0.0
        %v2658 = vadd.f32 %v2656, %v2657
        %v2659 = vsel %vm2643, %v2619, 0.0
        %v2660 = vadd.f32 %v2658, %v2659
        %v2661 = vsel %vm2643, %v2620, 0.0
        %v2662 = vadd.f32 %v2660, %v2661
        %v2663 = vsel %vm2643, %v2621, 0.0
        %v2664 = vadd.f32 %v2662, %v2663
        %v2665 = vsel %vm2643, %v2622, 0.0
        %v2666 = vadd.f32 %v2664, %v2665
        %v2667 = vsel %vm2643, %v2623, 0.0
        %v2668 = vadd.f32 %v2666, %v2667
        %v2669 = vsel %vm2643, %v2624, 0.0
        %v2670 = vadd.f32 %v2668, %v2669
        %v2671 = vsel %vm2643, %v2625, 0.0
        %v2672 = vadd.f32 %v2670, %v2671
        %v2673 = vsel %vm2643, %v2626, 0.0
        %v2674 = vadd.f32 %v2672, %v2673
        %v2675 = vsel %vm2643, %v2627, 0.0
        %v2676 = vadd.f32 %v2674, %v2675
        %v2677 = vsel %vm2643, %v2628, 0.0
        %v2678 = vadd.f32 %v2676, %v2677
        %v2679 = vsel %vm2643, %v2629, 0.0
        %v2680 = vadd.f32 %v2678, %v2679
        %v2681 = vsel %vm2643, %v2630, 0.0
        %v2682 = vadd.f32 %v2680, %v2681
        %v2683 = vsel %vm2643, %v2631, 0.0
        %v2684 = vadd.f32 %v2682, %v2683
        %v2685 = vsel %vm2643, %v2632, 0.0
        %v2686 = vadd.f32 %v2684, %v2685
        %v2687 = vsel %vm2643, %v2633, 0.0
        %v2688 = vadd.f32 %v2686, %v2687
        %v2689 = vsel %vm2643, %v2634, 0.0
        %v2690 = vadd.f32 %v2688, %v2689
        %v2691 = vsel %vm2643, %v2635, 0.0
        %v2692 = vadd.f32 %v2690, %v2691
        %v2693 = vsel %vm2643, %v2636, 0.0
        %v2694 = vadd.f32 %v2692, %v2693
        %v2695 = vsel %vm2643, %v2637, 0.0
        %v2696 = vadd.f32 %v2694, %v2695
        %v2697 = vsel %vm2643, %v2638, 0.0
        %v2698 = vadd.f32 %v2696, %v2697
        %v2699 = vsel %vm2643, %v2639, 0.0
        %v2700 = vadd.f32 %v2698, %v2699
        %v2701 = vsel %vm2643, %v2640, 0.0
        %v2702 = vadd.f32 %v2700, %v2701
        %v2703 = vsel %vm2643, %v2641, 0.0
        %v2704 = vadd.f32 %v2702, %v2703
        %v2705 = vsel %vm2643, %v2642, 0.0
        %v2706 = vadd.f32 %v2704, %v2705
        %v2707 = vrot.slane %v2706, 4
        %v2708 = vadd.f32 %v2706, %v2707
        %v2709 = vrot.slane %v2708, 2
        %v2710 = vadd.f32 %v2708, %v2709
        %v2711 = vrot.slane %v2710, 1
        %v2712 = vadd.f32 %v2710, %v2711
        %v2713 = vrcp.pop 256.0
        %v2714 = vmul.f32 256.0, %v2713
        %v2715 = vsub.f32 1.0, %v2714
        %v2716 = vmul.f32 %v2713, %v2715
        %v2717 = vadd.f32 %v2713, %v2716
        %vm2718 = vweird.f32 %v2713
        %v2719 = vsel %vm2718, %v2713, %v2717
        %v2720 = vmul.f32 %v2712, %v2719
        %v2721 = vld [vmem:[%s5] sm:$0x3]
        %2723 = vrot.lane.b32.xlu0 %v2721, 32
        %v2724 = vpop.permute.xlu0 %2723
        %v2726 = vmul.f32 %v2720, %v2724
        %2728 = vrot.lane.b32.xlu0 %v2726, 96
        %v2729 = vpop.permute.xlu0 %2728
        %vm2731 = vcmask 254976
        %v2732 = vsel %vm2731, %v2729, 0.0
        %2733 = vadd.xlane.f32.xlu0 %v2732
        %v2734 = vpop.xlane.xlu0 %2733
        %v2735 = vld [vmem:[%s6] sm:$0x3]
        %v2736 = vadd.f32 %v2734, %v2735
        %v2737 = vmax.f32 %v2736, 0.0
        %v2738 = vld [vmem:[%s7] sm:$0x3]
        %2740 = vset.pattern.permute.xlu0 0
        %2741 = vperm.xlu0 %2740, %v2737
        %v2742 = vpop.permute.xlu0 %2741
        %v2744 = vmul.f32 %v2742, %v2738
        %v2745 = vsel %vm2731, %v2744, 0.0
        %v2746 = vrot.slane %v2745, 4
        %v2747 = vadd.f32 %v2745, %v2746
        %v2748 = vrot.slane %v2747, 2
        %v2749 = vadd.f32 %v2747, %v2748
        %v2750 = vrot.slane %v2749, 1
        %v2751 = vadd.f32 %v2749, %v2750
        %v2752 = vld [vmem:[%s8] sm:$0x1]
        %v2753 = vadd.f32 %v2751, %v2752
        %v2754 = vxor.u32 %v2753, 2147483648
        %v2755 = vmul.f32 %v2754, 1.442695
        %v2756 = vpow.pop %v2755
        %v2757 = vadd.f32 %v2756, 1.0
        %v2758 = vrcp.pop %v2757
        %v2759 = vmul.f32 %v2757, %v2758
        %v2760 = vsub.f32 1.0, %v2759
        %v2761 = vmul.f32 %v2758, %v2760
        %v2762 = vadd.f32 %v2758, %v2761
        %vm2763 = vweird.f32 %v2757
        %vm2764 = vweird.f32 %v2758
        %vm2765 = vmor %vm2763, %vm2764
        %v2766 = vsel %vm2765, %v2758, %v2762
        %v2767 = vand.u32 2147483647, %v2757
        %vm2768 = vcmp.eq.f32.partialorder %v2767, 8.507059e+37
        %v2769 = vand.u32 %v2757, 2147483648
        %v2770 = vor.u32 1.1754944e-38, %v2769
        %v2771 = vsel %vm2768, %v2770, %v2766
        %v2772 = vmul.f32 1.0, %v2771
        %v2773 = vperm.slane %v2772, 0
        %2775 = vrot.lane.b32.xlu0 %v2773, 32
        %v2776 = vpop.permute.xlu0 %2775
        %v2778 = vmul.f32 %v2611, %v2776
        %v2779 = vmul.f32 %v2612, %v2776
        %v2780 = vmul.f32 %v2613, %v2776
        %v2781 = vmul.f32 %v2614, %v2776
        %v2782 = vmul.f32 %v2615, %v2776
        %v2783 = vmul.f32 %v2616, %v2776
        %v2784 = vmul.f32 %v2617, %v2776
        %v2785 = vmul.f32 %v2618, %v2776
        %v2786 = vmul.f32 %v2619, %v2776
        %v2787 = vmul.f32 %v2620, %v2776
        %v2788 = vmul.f32 %v2621, %v2776
        %v2789 = vmul.f32 %v2622, %v2776
        %v2790 = vmul.f32 %v2623, %v2776
        %v2791 = vmul.f32 %v2624, %v2776
        %v2792 = vmul.f32 %v2625, %v2776
        %v2793 = vmul.f32 %v2626, %v2776
        %v2794 = vmul.f32 %v2627, %v2776
        %v2795 = vmul.f32 %v2628, %v2776
        %v2796 = vmul.f32 %v2629, %v2776
        %v2797 = vmul.f32 %v2630, %v2776
        %v2798 = vmul.f32 %v2631, %v2776
        %v2799 = vmul.f32 %v2632, %v2776
        %v2800 = vmul.f32 %v2633, %v2776
        %v2801 = vmul.f32 %v2634, %v2776
        %v2802 = vmul.f32 %v2635, %v2776
        %v2803 = vmul.f32 %v2636, %v2776
        %v2804 = vmul.f32 %v2637, %v2776
        %v2805 = vmul.f32 %v2638, %v2776
        %v2806 = vmul.f32 %v2639, %v2776
        %v2807 = vmul.f32 %v2640, %v2776
        %v2808 = vmul.f32 %v2641, %v2776
        %v2809 = vmul.f32 %v2642, %v2776
        %2842 = vrot.lane.b32.xlu0 %v335, 32
        %v2843 = vpop.permute.xlu0 %2842
        %2844 = vrot.lane.b32.xlu0 %v336, 32
        %v2845 = vpop.permute.xlu0 %2844
        %2846 = vrot.lane.b32.xlu0 %v337, 32
        %v2847 = vpop.permute.xlu0 %2846
        %2848 = vrot.lane.b32.xlu0 %v338, 32
        %v2849 = vpop.permute.xlu0 %2848
        %2850 = vrot.lane.b32.xlu0 %v339, 32
        %v2851 = vpop.permute.xlu0 %2850
        %2852 = vrot.lane.b32.xlu0 %v340, 32
        %v2853 = vpop.permute.xlu0 %2852
        %2854 = vrot.lane.b32.xlu0 %v341, 32
        %v2855 = vpop.permute.xlu0 %2854
        %2856 = vrot.lane.b32.xlu0 %v342, 32
        %v2857 = vpop.permute.xlu0 %2856
        %2858 = vrot.lane.b32.xlu0 %v343, 32
        %v2859 = vpop.permute.xlu0 %2858
        %2860 = vrot.lane.b32.xlu0 %v344, 32
        %v2861 = vpop.permute.xlu0 %2860
        %2862 = vrot.lane.b32.xlu0 %v345, 32
        %v2863 = vpop.permute.xlu0 %2862
        %2864 = vrot.lane.b32.xlu0 %v346, 32
        %v2865 = vpop.permute.xlu0 %2864
        %2866 = vrot.lane.b32.xlu0 %v347, 32
        %v2867 = vpop.permute.xlu0 %2866
        %2868 = vrot.lane.b32.xlu0 %v348, 32
        %v2869 = vpop.permute.xlu0 %2868
        %2870 = vrot.lane.b32.xlu0 %v349, 32
        %v2871 = vpop.permute.xlu0 %2870
        %2872 = vrot.lane.b32.xlu0 %v350, 32
        %v2873 = vpop.permute.xlu0 %2872
        %2874 = vrot.lane.b32.xlu0 %v351, 32
        %v2875 = vpop.permute.xlu0 %2874
        %2876 = vrot.lane.b32.xlu0 %v352, 32
        %v2877 = vpop.permute.xlu0 %2876
        %2878 = vrot.lane.b32.xlu0 %v353, 32
        %v2879 = vpop.permute.xlu0 %2878
        %2880 = vrot.lane.b32.xlu0 %v354, 32
        %v2881 = vpop.permute.xlu0 %2880
        %2882 = vrot.lane.b32.xlu0 %v355, 32
        %v2883 = vpop.permute.xlu0 %2882
        %2884 = vrot.lane.b32.xlu0 %v356, 32
        %v2885 = vpop.permute.xlu0 %2884
        %2886 = vrot.lane.b32.xlu0 %v357, 32
        %v2887 = vpop.permute.xlu0 %2886
        %2888 = vrot.lane.b32.xlu0 %v358, 32
        %v2889 = vpop.permute.xlu0 %2888
        %2890 = vrot.lane.b32.xlu0 %v359, 32
        %v2891 = vpop.permute.xlu0 %2890
        %2892 = vrot.lane.b32.xlu0 %v360, 32
        %v2893 = vpop.permute.xlu0 %2892
        %2894 = vrot.lane.b32.xlu0 %v361, 32
        %v2895 = vpop.permute.xlu0 %2894
        %2896 = vrot.lane.b32.xlu0 %v362, 32
        %v2897 = vpop.permute.xlu0 %2896
        %2898 = vrot.lane.b32.xlu0 %v363, 32
        %v2899 = vpop.permute.xlu0 %2898
        %2900 = vrot.lane.b32.xlu0 %v364, 32
        %v2901 = vpop.permute.xlu0 %2900
        %2902 = vrot.lane.b32.xlu0 %v365, 32
        %v2903 = vpop.permute.xlu0 %2902
        %2904 = vrot.lane.b32.xlu0 %v366, 32
        %v2905 = vpop.permute.xlu0 %2904
        %v2938 = vadd.f32 %v2778, %v2843
        %v2939 = vadd.f32 %v2779, %v2845
        %v2940 = vadd.f32 %v2780, %v2847
        %v2941 = vadd.f32 %v2781, %v2849
        %v2942 = vadd.f32 %v2782, %v2851
        %v2943 = vadd.f32 %v2783, %v2853
        %v2944 = vadd.f32 %v2784, %v2855
        %v2945 = vadd.f32 %v2785, %v2857
        %v2946 = vadd.f32 %v2786, %v2859
        %v2947 = vadd.f32 %v2787, %v2861
        %v2948 = vadd.f32 %v2788, %v2863
        %v2949 = vadd.f32 %v2789, %v2865
        %v2950 = vadd.f32 %v2790, %v2867
        %v2951 = vadd.f32 %v2791, %v2869
        %v2952 = vadd.f32 %v2792, %v2871
        %v2953 = vadd.f32 %v2793, %v2873
        %v2954 = vadd.f32 %v2794, %v2875
        %v2955 = vadd.f32 %v2795, %v2877
        %v2956 = vadd.f32 %v2796, %v2879
        %v2957 = vadd.f32 %v2797, %v2881
        %v2958 = vadd.f32 %v2798, %v2883
        %v2959 = vadd.f32 %v2799, %v2885
        %v2960 = vadd.f32 %v2800, %v2887
        %v2961 = vadd.f32 %v2801, %v2889
        %v2962 = vadd.f32 %v2802, %v2891
        %v2963 = vadd.f32 %v2803, %v2893
        %v2964 = vadd.f32 %v2804, %v2895
        %v2965 = vadd.f32 %v2805, %v2897
        %v2966 = vadd.f32 %v2806, %v2899
        %v2967 = vadd.f32 %v2807, %v2901
        %v2968 = vadd.f32 %v2808, %v2903
        %v2969 = vadd.f32 %v2809, %v2905
        %3002 = vrot.lane.b32.xlu0 %v2938, 96
        %v3003 = vpop.permute.xlu0 %3002
        %3004 = vrot.lane.b32.xlu0 %v2939, 96
        %v3005 = vpop.permute.xlu0 %3004
        %3006 = vrot.lane.b32.xlu0 %v2940, 96
        %v3007 = vpop.permute.xlu0 %3006
        %3008 = vrot.lane.b32.xlu0 %v2941, 96
        %v3009 = vpop.permute.xlu0 %3008
        %3010 = vrot.lane.b32.xlu0 %v2942, 96
        %v3011 = vpop.permute.xlu0 %3010
        %3012 = vrot.lane.b32.xlu0 %v2943, 96
        %v3013 = vpop.permute.xlu0 %3012
        %3014 = vrot.lane.b32.xlu0 %v2944, 96
        %v3015 = vpop.permute.xlu0 %3014
        %3016 = vrot.lane.b32.xlu0 %v2945, 96
        %v3017 = vpop.permute.xlu0 %3016
        %3018 = vrot.lane.b32.xlu0 %v2946, 96
        %v3019 = vpop.permute.xlu0 %3018
        %3020 = vrot.lane.b32.xlu0 %v2947, 96
        %v3021 = vpop.permute.xlu0 %3020
        %3022 = vrot.lane.b32.xlu0 %v2948, 96
        %v3023 = vpop.permute.xlu0 %3022
        %3024 = vrot.lane.b32.xlu0 %v2949, 96
        %v3025 = vpop.permute.xlu0 %3024
        %3026 = vrot.lane.b32.xlu0 %v2950, 96
        %v3027 = vpop.permute.xlu0 %3026
        %3028 = vrot.lane.b32.xlu0 %v2951, 96
        %v3029 = vpop.permute.xlu0 %3028
        %3030 = vrot.lane.b32.xlu0 %v2952, 96
        %v3031 = vpop.permute.xlu0 %3030
        %3032 = vrot.lane.b32.xlu0 %v2953, 96
        %v3033 = vpop.permute.xlu0 %3032
        %3034 = vrot.lane.b32.xlu0 %v2954, 96
        %v3035 = vpop.permute.xlu0 %3034
        %3036 = vrot.lane.b32.xlu0 %v2955, 96
        %v3037 = vpop.permute.xlu0 %3036
        %3038 = vrot.lane.b32.xlu0 %v2956, 96
        %v3039 = vpop.permute.xlu0 %3038
        %3040 = vrot.lane.b32.xlu0 %v2957, 96
        %v3041 = vpop.permute.xlu0 %3040
        %3042 = vrot.lane.b32.xlu0 %v2958, 96
        %v3043 = vpop.permute.xlu0 %3042
        %3044 = vrot.lane.b32.xlu0 %v2959, 96
        %v3045 = vpop.permute.xlu0 %3044
        %3046 = vrot.lane.b32.xlu0 %v2960, 96
        %v3047 = vpop.permute.xlu0 %3046
        %3048 = vrot.lane.b32.xlu0 %v2961, 96
        %v3049 = vpop.permute.xlu0 %3048
        %3050 = vrot.lane.b32.xlu0 %v2962, 96
        %v3051 = vpop.permute.xlu0 %3050
        %3052 = vrot.lane.b32.xlu0 %v2963, 96
        %v3053 = vpop.permute.xlu0 %3052
        %3054 = vrot.lane.b32.xlu0 %v2964, 96
        %v3055 = vpop.permute.xlu0 %3054
        %3056 = vrot.lane.b32.xlu0 %v2965, 96
        %v3057 = vpop.permute.xlu0 %3056
        %3058 = vrot.lane.b32.xlu0 %v2966, 96
        %v3059 = vpop.permute.xlu0 %3058
        %3060 = vrot.lane.b32.xlu0 %v2967, 96
        %v3061 = vpop.permute.xlu0 %3060
        %3062 = vrot.lane.b32.xlu0 %v2968, 96
        %v3063 = vpop.permute.xlu0 %3062
        %3064 = vrot.lane.b32.xlu0 %v2969, 96
        %v3065 = vpop.permute.xlu0 %3064
        %3098 = vst.msk [vmem:[%s325] sm:$0xff] %vm545, %v3003
        %3099 = vst.msk [vmem:[%s325 + $0x8] sm:$0xff] %vm545, %v3005
        %3100 = vst.msk [vmem:[%s325 + $0x10] sm:$0xff] %vm545, %v3007
        %3101 = vst.msk [vmem:[%s325 + $0x18] sm:$0xff] %vm545, %v3009
        %3102 = vst.msk [vmem:[%s325 + $0x20] sm:$0xff] %vm545, %v3011
        %3103 = vst.msk [vmem:[%s325 + $0x28] sm:$0xff] %vm545, %v3013
        %3104 = vst.msk [vmem:[%s325 + $0x30] sm:$0xff] %vm545, %v3015
        %3105 = vst.msk [vmem:[%s325 + $0x38] sm:$0xff] %vm545, %v3017
        %3106 = vst.msk [vmem:[%s325 + $0x40] sm:$0xff] %vm545, %v3019
        %3107 = vst.msk [vmem:[%s325 + $0x48] sm:$0xff] %vm545, %v3021
        %3108 = vst.msk [vmem:[%s325 + $0x50] sm:$0xff] %vm545, %v3023
        %3109 = vst.msk [vmem:[%s325 + $0x58] sm:$0xff] %vm545, %v3025
        %3110 = vst.msk [vmem:[%s325 + $0x60] sm:$0xff] %vm545, %v3027
        %3111 = vst.msk [vmem:[%s325 + $0x68] sm:$0xff] %vm545, %v3029
        %3112 = vst.msk [vmem:[%s325 + $0x70] sm:$0xff] %vm545, %v3031
        %3113 = vst.msk [vmem:[%s325 + $0x78] sm:$0xff] %vm545, %v3033
        %3114 = vst.msk [vmem:[%s325 + $0x80] sm:$0xff] %vm545, %v3035
        %3115 = vst.msk [vmem:[%s325 + $0x88] sm:$0xff] %vm545, %v3037
        %3116 = vst.msk [vmem:[%s325 + $0x90] sm:$0xff] %vm545, %v3039
        %3117 = vst.msk [vmem:[%s325 + $0x98] sm:$0xff] %vm545, %v3041
        %3118 = vst.msk [vmem:[%s325 + $0xa0] sm:$0xff] %vm545, %v3043
        %3119 = vst.msk [vmem:[%s325 + $0xa8] sm:$0xff] %vm545, %v3045
        %3120 = vst.msk [vmem:[%s325 + $0xb0] sm:$0xff] %vm545, %v3047
        %3121 = vst.msk [vmem:[%s325 + $0xb8] sm:$0xff] %vm545, %v3049
        %3122 = vst.msk [vmem:[%s325 + $0xc0] sm:$0xff] %vm545, %v3051
        %3123 = vst.msk [vmem:[%s325 + $0xc8] sm:$0xff] %vm545, %v3053
        %3124 = vst.msk [vmem:[%s325 + $0xd0] sm:$0xff] %vm545, %v3055
        %3125 = vst.msk [vmem:[%s325 + $0xd8] sm:$0xff] %vm545, %v3057
        %3126 = vst.msk [vmem:[%s325 + $0xe0] sm:$0xff] %vm545, %v3059
        %3127 = vst.msk [vmem:[%s325 + $0xe8] sm:$0xff] %vm545, %v3061
        %3128 = vst.msk [vmem:[%s325 + $0xf0] sm:$0xff] %vm545, %v3063
        %3129 = vst.msk [vmem:[%s325 + $0xf8] sm:$0xff] %vm545, %v3065
        %s3130 = sand.u32 %s225, 1
        %s3131 = scalar_lea.sflag [#allocation3], %s3130
        %s3132 = sand.u32 %s225, 1
        %s3133 = smul.addr %s3132, 256
        %s3134 = scalar_lea.vmem [#allocation2], %s3133
        // Predicated region
        $region57: #{rcab_forward.1} parent=55 // pred_check
          %p3135 = pneg %p235
        $region58: #{rcab_forward.1} parent=55 // pred_check_branch
          %3137 = sbr.rel (%p3135) target = $region60
        $region59: #{rcab_forward.1} parent=55 // pred_region
          %3139 = vsyncadd %s3131, 0
          %s3140 = smul.addr %s23, 32
          %s3141 = smul.addr %s3140, 8
          %s3142 = scalar_lea.hbm %s9, %s3141
          %s3143 = sshll.u32 %s3134, 4
          %s3144 = int_to_ptr.vmem [resolvable:$true] %s3143
          %s3145 = sshll.u32 %s3142, 4
          %s3146 = int_to_ptr.hbm [resolvable:$true] %s3145
          %3151 = dma.vmem_to_hbm [thread:$0]  %s3144, 4096, %s3146, %s3131, 128, 128, 8
        $region60: #{rcab_forward.1} parent=55 // pred_fallthru
          _
      $region56: #{rcab_forward.1} parent=5 // pred_fallthru
        _
      %p3152 = scmp.le.s32.totalorder 2, %s18
      // Predicated region
      $region61: #{rcab_forward.1} parent=5 // pred_check
        %p3153 = pneg %p3152
      $region62: #{rcab_forward.1} parent=5 // pred_check_branch
        %3155 = sbr.rel (%p3153) target = $region64
      $region63: #{rcab_forward.1} parent=5 // pred_region
        %s3156 = ssub.s32 %s18, 2
        // Predicated region
        $region65: #{rcab_forward.1} parent=63 // pred_check
          %p3157 = pneg %p241
        $region66: #{rcab_forward.1} parent=63 // pred_check_branch
          %3159 = sbr.rel (%p3157) target = $region68
        $region67: #{rcab_forward.1} parent=63 // pred_region
          %s3160 = sand.u32 %s226, 1
          %s3161 = scalar_lea.sflag [#allocation3], %s3160
          %s3162 = sand.u32 %s226, 1
          %s3163 = smul.addr %s3162, 256
          %s3164 = scalar_lea.vmem [#allocation2], %s3163
          %3166 = dma.done %s3161, 4096
        $region68: #{rcab_forward.1} parent=63 // pred_fallthru
          _
      $region64: #{rcab_forward.1} parent=5 // pred_fallthru
        _
    $region6: #{rcab_forward.1} parent=1 // loop_footer
      %s22 = sadd.s32 1, %s18
    $region7: #{rcab_forward.1} parent=1 // loop_footer_branch
      %17 = sbr.rel target = $region3
    $region8: #{rcab_forward.1} parent=1 // loop_exit
      _
    %3167 = vsyncpa [#allocation3], 1
    %s3168 = scalar_lea.sflag [#allocation3], 1
    %3169 = vsyncpa %s3168, 1

</llo_original>
